<compile_context>
chip_gen: v5e
topology: v5e:2x2
jax: 0.10.0
libtpu: 0.0.40
codegen_flags: <defaults>
</compile_context>

<pallas_src>
import jax
import jax.numpy as jnp
import numpy as np
from jax.experimental import pallas as pl
from jax.experimental.pallas import tpu as pltpu


# ----------------------------------------------------------------------------
# Fused kernel: conv1+ReLU -> bilinear x2 -> skip resize -> concat -> conv2+ReLU
# ----------------------------------------------------------------------------
def _fused_deconv_kernel(p_ref, s_ref, w1_ref, b1_ref, w2_ref, b2_ref,
                         ahx_ref, awx_ref, ahs_ref, aws_ref,
                         o_ref, xpad_ref, cpad_ref):
    """One batch element per grid step; all intermediates stay in VMEM.

    p_ref  : (1, H,  Kp)                 conv1 input, flat (W,Cin), lane-padded
    s_ref  : (1, Hs, Ks)                 skip feature, flat (Ws,Cs), lane-padded
    w1_ref : (3, Kp, W*Cout)             conv1 band (block-Toeplitz) weights / dy
    b1_ref : (1, W*Cout)                 conv1 bias tiled over width
    w2_ref : (3, W2*(Cs+Cout), W2*Cout)  conv2 band weights for [s_half | up_half]
    b2_ref : (1, W2*Cout)
    ahx_ref: (2H, H)                     row-interp matrix for conv1 output
    awx_ref: (W*Cout, W2*Cout)           kron(col-interp.T, I_Cout)
    ahs_ref: (2H, Hs)                    row-interp matrix for the skip feature
    aws_ref: (Ks, W2*Cs)                 kron(col-interp.T, I_Cs), rows lane-padded
    o_ref  : (1, 2H, W2*Cout)            output, lane-dense flat layout
    xpad_ref: (H+2,  Kp)            f32  row-padded conv1 input (scratch)
    cpad_ref: (H2+2, W2*(Cs+Cout))  f32  row-padded [s_up | upconv] concat (scratch)
    """
    H = p_ref.shape[1]
    H2 = o_ref.shape[1]
    Wsh = aws_ref.shape[1]                      # width of the s-half = W2*Cs
    mxu = w1_ref.dtype

    def mm(a, b):
        return jax.lax.dot_general(a.astype(mxu), b.astype(mxu),
                                   (((1,), (0,)), ((), ())),
                                   preferred_element_type=jnp.float32)

    # Zero ONLY the halo rows (2 rows per scratch); interior rows are fully
    # overwritten every grid step.  Done every step (NOT gated on
    # program_id==0) so the invariant also holds when the batch axis is split
    # "parallel" across TensorCores — scratch is per-core and the core that
    # never sees program_id 0 still needs zeroed halos.  Cost: 4 tiny rows.
    zx = jnp.zeros((1, xpad_ref.shape[1]), xpad_ref.dtype)
    xpad_ref[0:1, :] = zx
    xpad_ref[H + 1:H + 2, :] = zx
    zc = jnp.zeros((1, cpad_ref.shape[1]), cpad_ref.dtype)
    cpad_ref[0:1, :] = zc
    cpad_ref[H2 + 1:H2 + 2, :] = zc

    # ---- conv1 + ReLU: 3 band matmuls (one per kernel row) ------------------
    xpad_ref[1:H + 1, :] = p_ref[0]
    y1 = mm(xpad_ref[0:H, :], w1_ref[0])
    y1 = y1 + mm(xpad_ref[1:H + 1, :], w1_ref[1])
    y1 = y1 + mm(xpad_ref[2:H + 2, :], w1_ref[2])
    x1 = jnp.maximum(y1 + b1_ref[...], 0.0)                   # (H, W*Cout) f32

    # ---- separable bilinear resizes; column (kron) matrix contracted FIRST
    # ---- (fewer MXU FLOPs whenever H < W*C) ---------------------------------
    up = mm(ahx_ref[...], mm(x1, awx_ref[...]))               # (2H, W2*Cout) f32
    s_up = mm(ahs_ref[...], mm(s_ref[0], aws_ref[...]))       # (2H, W2*Cs)   f32

    # ---- conv2 + ReLU: concat materialized ONCE into the padded scratch,
    # ---- then 3 matmuls against the combined [s_half | up_half] band --------
    cpad_ref[1:H2 + 1, 0:Wsh] = s_up
    cpad_ref[1:H2 + 1, Wsh:] = up
    y2 = mm(cpad_ref[0:H2, :], w2_ref[0])
    y2 = y2 + mm(cpad_ref[1:H2 + 1, :], w2_ref[1])
    y2 = y2 + mm(cpad_ref[2:H2 + 2, :], w2_ref[2])
    o_ref[0] = jnp.maximum(y2 + b2_ref[...], 0.0).astype(o_ref.dtype)


# ----------------------------------------------------------------------------
# Host-side helpers: band weights, interpolation matrices, lane padding
# ----------------------------------------------------------------------------
def _band_weights(w_hwio, W):
    """Fold the width taps of a 3x3 conv into block-Toeplitz matrices.

    w_hwio: (3, 3, Ci, Co).  Returns (3, W*Ci, W*Co) with
      B[dy][(q+dx-1)*Ci + i, q*Co + o] = w[dy, dx, i, o]   (clipped at edges,
    which implements the width zero-padding of a 'same' conv).
    """
    kh, kw, Ci, Co = w_hwio.shape
    mats = []
    for dy in range(kh):
        B = jnp.zeros((W * Ci, W * Co), jnp.float32)
        for dx in range(kw):
            shift = jnp.eye(W, W, k=1 - dx, dtype=jnp.float32)   # [q+dx-1, q] = 1
            B = B + jnp.einsum("pq,io->piqo", shift,
                               w_hwio[dy, dx].astype(jnp.float32)
                               ).reshape(W * Ci, W * Co)
        mats.append(B)
    return jnp.stack(mats, axis=0)


def _interp_matrix(out_size, in_size):
    """1-D bilinear interpolation matrix, align_corners=True (PyTorch)."""
    if in_size == 1:
        return jnp.ones((out_size, 1), jnp.float32)
    if out_size == 1:
        a = jnp.zeros((1, in_size), jnp.float32)
        return a.at[0, 0].set(1.0)
    src = jnp.arange(out_size, dtype=jnp.float32) * (in_size - 1) / (out_size - 1)
    i0 = jnp.clip(jnp.floor(src).astype(jnp.int32), 0, in_size - 2)
    frac = src - i0.astype(jnp.float32)
    rows = jnp.arange(out_size)
    a = jnp.zeros((out_size, in_size), jnp.float32)
    a = a.at[rows, i0].add(1.0 - frac)
    a = a.at[rows, i0 + 1].add(frac)
    return a


def _pad_lanes(x, axis, multiple=128):
    """Zero-pad `axis` of x up to a multiple of `multiple`. Returns (x, new_size)."""
    size = x.shape[axis]
    pad = (-size) % multiple
    if pad == 0:
        return x, size
    widths = [(0, 0)] * x.ndim
    widths[axis] = (0, pad)
    return jnp.pad(x, widths), size + pad


# ----------------------------------------------------------------------------
# deconv_layer forward (parameters passed explicitly, NCHW in/out)
# ----------------------------------------------------------------------------
def deconv_layer_forward(s_nchw, p_nchw, params, mxu_dtype=jnp.bfloat16):
    w1, b1 = params["w1"], params["b1"]        # (3,3,Cin,Cout), (Cout,)
    w2, b2 = params["w2"], params["b2"]        # (3,3,2*Cout,Cout), (Cout,)

    N, Cin, H, W = p_nchw.shape
    _, Cs, Hs, Ws = s_nchw.shape
    Cout = w1.shape[-1]
    H2, W2 = 2 * H, 2 * W

    # NCHW -> NHWC -> flatten (W, C) into a lane-dense trailing dim; zero-pad
    # the contraction dims to multiples of 128 so MXU loads are unmasked.
    p = jnp.transpose(p_nchw, (0, 2, 3, 1)).reshape(N, H, W * Cin)
    s = jnp.transpose(s_nchw, (0, 2, 3, 1)).reshape(N, Hs, Ws * Cs)
    p, Kp = _pad_lanes(p, 2)
    s, Ks = _pad_lanes(s, 2)

    # Band (block-Toeplitz) conv weights.  conv2 consumes the concat
    # cat([s_up, upconv], ch); with the concat laid out block-wise in scratch
    # as [s_half | up_half], the combined band is a K-axis concat of the two
    # per-half bands -> conv2 becomes 3 matmuls instead of 6.
    B1 = _band_weights(w1, W)                                        # (3, W*Cin,  W*Cout)
    B1 = jnp.pad(B1, ((0, 0), (0, Kp - W * Cin), (0, 0))).astype(mxu_dtype)
    B2s = _band_weights(w2[:, :, :Cs, :], W2)                        # (3, W2*Cs,   W2*Cout)
    B2u = _band_weights(w2[:, :, Cs:, :], W2)                        # (3, W2*Cout, W2*Cout)
    B2 = jnp.concatenate([B2s, B2u], axis=1).astype(mxu_dtype)       # (3, W2*(Cs+Cout), W2*Cout)
    b1f = jnp.tile(b1.astype(jnp.float32), W)[None, :]               # (1, W*Cout)
    b2f = jnp.tile(b2.astype(jnp.float32), W2)[None, :]              # (1, W2*Cout)

    # Separable align_corners=True bilinear resize as matrices; the width
    # matrix is kron'd with I_C so results come out directly in (rows, 2W*C).
    ahx = _interp_matrix(H2, H).astype(mxu_dtype)                                    # (2H, H)
    awx = jnp.kron(_interp_matrix(W2, W).T,
                   jnp.eye(Cout, dtype=jnp.float32)).astype(mxu_dtype)               # (W*Cout, W2*Cout)
    ahs = _interp_matrix(H2, Hs).astype(mxu_dtype)                                   # (2H, Hs)
    aws = jnp.kron(_interp_matrix(W2, Ws).T, jnp.eye(Cs, dtype=jnp.float32))         # (Ws*Cs, W2*Cs)
    aws = jnp.pad(aws, ((0, Ks - Ws * Cs), (0, 0))).astype(mxu_dtype)                # (Ks,    W2*Cs)

    Kc = W2 * (Cs + Cout)   # concat scratch width = s-half + upconv-half

    out_flat = pl.pallas_call(
        _fused_deconv_kernel,
        out_shape=jax.ShapeDtypeStruct((N, H2, W2 * Cout), jnp.float32),
        grid=(N,),
        in_specs=[
            pl.BlockSpec((1, H, Kp), lambda n: (n, 0, 0)),
            pl.BlockSpec((1, Hs, Ks), lambda n: (n, 0, 0)),
            pl.BlockSpec((3, Kp, W * Cout), lambda n: (0, 0, 0)),
            pl.BlockSpec((1, W * Cout), lambda n: (0, 0)),
            pl.BlockSpec((3, Kc, W2 * Cout), lambda n: (0, 0, 0)),
            pl.BlockSpec((1, W2 * Cout), lambda n: (0, 0)),
            pl.BlockSpec((H2, H), lambda n: (0, 0)),
            pl.BlockSpec((W * Cout, W2 * Cout), lambda n: (0, 0)),
            pl.BlockSpec((H2, Hs), lambda n: (0, 0)),
            pl.BlockSpec((Ks, W2 * Cs), lambda n: (0, 0)),
        ],
        out_specs=pl.BlockSpec((1, H2, W2 * Cout), lambda n: (n, 0, 0)),
        scratch_shapes=[
            pltpu.VMEM((H + 2, Kp), jnp.float32),     # row-padded conv1 input
            pltpu.VMEM((H2 + 2, Kc), jnp.float32),    # row-padded [s_up | upconv]
        ],
        compiler_params=pltpu.CompilerParams(
            dimension_semantics=("parallel",),
            # Explicit scoped-VMEM budget (safe on all generations at this
            # working set; re-derive together with tile sizes at production H/W).
            vmem_limit_bytes=32 * 1024 * 1024),
    )(p, s, B1, b1f, B2, b2f, ahx, awx, ahs, aws)

    # Row-major reshape + transpose back to the PyTorch NCHW layout.
    out = out_flat.reshape(N, H2, W2, Cout)
    return jnp.transpose(out, (0, 3, 1, 2))


def init_params(key, in_channels, out_channels):
    k1, k2, k3, k4 = jax.random.split(key, 4)
    # PyTorch conv weight layout is (O, I, kh, kw); kernel uses (kh, kw, I, O).
    w1_oihw = jax.random.normal(k1, (out_channels, in_channels, 3, 3), jnp.float32) * 0.1
    b1 = jax.random.normal(k2, (out_channels,), jnp.float32) * 0.1
    w2_oihw = jax.random.normal(k3, (out_channels, out_channels * 2, 3, 3), jnp.float32) * 0.1
    b2 = jax.random.normal(k4, (out_channels,), jnp.float32) * 0.1
    return {
        "w1": jnp.transpose(w1_oihw, (2, 3, 1, 0)), "b1": b1,
        "w2": jnp.transpose(w2_oihw, (2, 3, 1, 0)), "b2": b2,
        "w1_oihw": w1_oihw, "w2_oihw": w2_oihw,
    }


# ----------------------------------------------------------------------------
# Pure-JAX reference (for correctness check only)
# ----------------------------------------------------------------------------
def _ref_conv_relu(x_nchw, w_oihw, b):
    y = jax.lax.conv_general_dilated(
        x_nchw, w_oihw, window_strides=(1, 1), padding=((1, 1), (1, 1)),
        dimension_numbers=("NCHW", "OIHW", "NCHW"))
    return jax.nn.relu(y + b[None, :, None, None])


def _ref_resize(x_nchw, out_h, out_w):
    ah = _interp_matrix(out_h, x_nchw.shape[2])
    aw = _interp_matrix(out_w, x_nchw.shape[3])
    return jnp.einsum("iu,jv,ncuv->ncij", ah, aw, x_nchw)


def _ref_forward(s, p, params):
    x = _ref_conv_relu(p, params["w1_oihw"], params["b1"])
    h, w = 2 * x.shape[2], 2 * x.shape[3]
    upconv = _ref_resize(x, h, w)
    s_up = _ref_resize(s, h, w)
    ftr = jnp.concatenate([s_up, upconv], axis=1)
    return _ref_conv_relu(ftr, params["w2_oihw"], params["b2"])


# ----------------------------------------------------------------------------
if __name__ == "__main__":
    in_channels, out_channels = 4, 8
    N, H, W = 2, 16, 16

    key = jax.random.PRNGKey(0)
    kp, ks, kw = jax.random.split(key, 3)
    p = jax.random.normal(kp, (N, in_channels, H, W), jnp.float32)       # conv1 input
    s = jax.random.normal(ks, (N, out_channels, 12, 12), jnp.float32)    # skip feature
    params = init_params(kw, in_channels, out_channels)

    fwd_bf16 = jax.jit(lambda s_, p_, prm: deconv_layer_forward(s_, p_, prm, jnp.bfloat16))
    fwd_f32 = jax.jit(lambda s_, p_, prm: deconv_layer_forward(s_, p_, prm, jnp.float32))

    ref = jax.block_until_ready(_ref_forward(s, p, params))

    # f32 MXU path: numerical check of the fused structure.
    out_f32 = jax.block_until_ready(fwd_f32(s, p, params))
    assert out_f32.shape == (N, out_channels, 2 * H, 2 * W), out_f32.shape
    err_f32 = float(np.max(np.abs(np.asarray(out_f32) - np.asarray(ref))))
    assert np.allclose(np.asarray(out_f32), np.asarray(ref), atol=2e-2, rtol=2e-2), err_f32

    # bf16 MXU path (default: halves weight DMA, doubles MXU rate).
    out_bf16 = jax.block_until_ready(fwd_bf16(s, p, params))
    assert out_bf16.shape == (N, out_channels, 2 * H, 2 * W), out_bf16.shape
    err_bf16 = float(np.max(np.abs(np.asarray(out_bf16) - np.asarray(ref))))
    assert np.allclose(np.asarray(out_bf16), np.asarray(ref), atol=5e-2, rtol=5e-2), err_bf16

    print("KERNEL_OK")
</pallas_src>

<mosaic_0001>
module attributes {stable_mosaic.version = 11 : i64} {
  func.func @_fused_deconv_kernel(%arg0: i32, %arg1: memref<1x16x128xf32, #tpu.memory_space<vmem>>, %arg2: memref<1x12x128xf32, #tpu.memory_space<vmem>>, %arg3: memref<3x128x128xf32, #tpu.memory_space<vmem>>, %arg4: memref<1x128xf32, #tpu.memory_space<vmem>>, %arg5: memref<3x512x256xf32, #tpu.memory_space<vmem>>, %arg6: memref<1x256xf32, #tpu.memory_space<vmem>>, %arg7: memref<32x16xf32, #tpu.memory_space<vmem>>, %arg8: memref<128x256xf32, #tpu.memory_space<vmem>>, %arg9: memref<32x12xf32, #tpu.memory_space<vmem>>, %arg10: memref<128x256xf32, #tpu.memory_space<vmem>>, %arg11: memref<1x32x256xf32, #tpu.memory_space<vmem>>, %arg12: memref<18x128xf32, #tpu.memory_space<vmem>>, %arg13: memref<34x512xf32, #tpu.memory_space<vmem>>) attributes {dimension_semantics = [#tpu.dimension_semantics<parallel>], iteration_bounds = array<i64: 2>, scalar_prefetch = 0 : i64, scratch_operands = 2 : i64, tpu.core_type = #tpu.core_type<tc>, window_params = [{transform_indices = @transform_0, window_bounds = array<i64: 1, 16, 128>}, {transform_indices = @transform_1, window_bounds = array<i64: 1, 12, 128>}, {pipeline_mode = #tpu.pipeline_mode<synchronous>, transform_indices = @transform_2, window_bounds = array<i64: 3, 128, 128>}, {pipeline_mode = #tpu.pipeline_mode<synchronous>, transform_indices = @transform_3, window_bounds = array<i64: 1, 128>}, {pipeline_mode = #tpu.pipeline_mode<synchronous>, transform_indices = @transform_4, window_bounds = array<i64: 3, 512, 256>}, {pipeline_mode = #tpu.pipeline_mode<synchronous>, transform_indices = @transform_5, window_bounds = array<i64: 1, 256>}, {pipeline_mode = #tpu.pipeline_mode<synchronous>, transform_indices = @transform_6, window_bounds = array<i64: 32, 16>}, {pipeline_mode = #tpu.pipeline_mode<synchronous>, transform_indices = @transform_7, window_bounds = array<i64: 128, 256>}, {pipeline_mode = #tpu.pipeline_mode<synchronous>, transform_indices = @transform_8, window_bounds = array<i64: 32, 12>}, {pipeline_mode = #tpu.pipeline_mode<synchronous>, transform_indices = @transform_9, window_bounds = array<i64: 128, 256>}, {transform_indices = @transform_10, window_bounds = array<i64: 1, 32, 256>}]} {
    %cst = arith.constant 0.000000e+00 : f32
    %0 = vector.broadcast %cst : f32 to vector<1x128xf32>
    %c0 = arith.constant 0 : index
    %c0_0 = arith.constant 0 : index
    %1 = vector.load %arg12[%c0, %c0_0] : memref<18x128xf32, #tpu.memory_space<vmem>>, vector<1x128xf32>
    tpu.vector_store %arg12[%c0, %c0_0], %0 {strides = array<i32>} : memref<18x128xf32, #tpu.memory_space<vmem>>, vector<1x128xf32>,
    %c17 = arith.constant 17 : index
    %c0_1 = arith.constant 0 : index
    %2 = vector.load %arg12[%c17, %c0_1] : memref<18x128xf32, #tpu.memory_space<vmem>>, vector<1x128xf32>
    tpu.vector_store %arg12[%c17, %c0_1], %0 {strides = array<i32>} : memref<18x128xf32, #tpu.memory_space<vmem>>, vector<1x128xf32>,
    %cst_2 = arith.constant 0.000000e+00 : f32
    %3 = vector.broadcast %cst_2 : f32 to vector<1x512xf32>
    %c0_3 = arith.constant 0 : index
    %c0_4 = arith.constant 0 : index
    %4 = vector.load %arg13[%c0_3, %c0_4] : memref<34x512xf32, #tpu.memory_space<vmem>>, vector<1x512xf32>
    tpu.vector_store %arg13[%c0_3, %c0_4], %3 {strides = array<i32>} : memref<34x512xf32, #tpu.memory_space<vmem>>, vector<1x512xf32>,
    %c33 = arith.constant 33 : index
    %c0_5 = arith.constant 0 : index
    %5 = vector.load %arg13[%c33, %c0_5] : memref<34x512xf32, #tpu.memory_space<vmem>>, vector<1x512xf32>
    tpu.vector_store %arg13[%c33, %c0_5], %3 {strides = array<i32>} : memref<34x512xf32, #tpu.memory_space<vmem>>, vector<1x512xf32>,
    %c0_6 = arith.constant 0 : index
    %c0_7 = arith.constant 0 : index
    %c0_8 = arith.constant 0 : index
    %6 = vector.load %arg1[%c0_6, %c0_7, %c0_8] : memref<1x16x128xf32, #tpu.memory_space<vmem>>, vector<1x16x128xf32>
    %7 = vector.shape_cast %6 : vector<1x16x128xf32> to vector<16x128xf32>
    %c1 = arith.constant 1 : index
    %c0_9 = arith.constant 0 : index
    %8 = vector.load %arg12[%c1, %c0_9] : memref<18x128xf32, #tpu.memory_space<vmem>>, vector<16x128xf32>
    tpu.vector_store %arg12[%c1, %c0_9], %7 {strides = array<i32>} : memref<18x128xf32, #tpu.memory_space<vmem>>, vector<16x128xf32>,
    %c0_10 = arith.constant 0 : index
    %c0_11 = arith.constant 0 : index
    %9 = vector.load %arg12[%c0_10, %c0_11] : memref<18x128xf32, #tpu.memory_space<vmem>>, vector<16x128xf32>
    %c0_12 = arith.constant 0 : index
    %c0_13 = arith.constant 0 : index
    %c0_14 = arith.constant 0 : index
    %10 = vector.load %arg3[%c0_12, %c0_13, %c0_14] : memref<3x128x128xf32, #tpu.memory_space<vmem>>, vector<1x128x128xf32>
    %11 = vector.shape_cast %10 : vector<1x128x128xf32> to vector<128x128xf32>
    %cst_15 = arith.constant dense<0.000000e+00> : vector<16x128xf32>
    %12 = tpu.matmul %9, %11, %cst_15 {dimension_numbers = #tpu.dot_dimension_numbers<[1], [0], [0], [1], [0, 0, 1, 1], [], []>} : vector<16x128xf32>, vector<128x128xf32>, vector<16x128xf32> -> vector<16x128xf32>
    %c1_16 = arith.constant 1 : index
    %c0_17 = arith.constant 0 : index
    %13 = vector.load %arg12[%c1_16, %c0_17] : memref<18x128xf32, #tpu.memory_space<vmem>>, vector<16x128xf32>
    %c1_18 = arith.constant 1 : index
    %c0_19 = arith.constant 0 : index
    %c0_20 = arith.constant 0 : index
    %14 = vector.load %arg3[%c1_18, %c0_19, %c0_20] : memref<3x128x128xf32, #tpu.memory_space<vmem>>, vector<1x128x128xf32>
    %15 = vector.shape_cast %14 : vector<1x128x128xf32> to vector<128x128xf32>
    %cst_21 = arith.constant dense<0.000000e+00> : vector<16x128xf32>
    %16 = tpu.matmul %13, %15, %cst_21 {dimension_numbers = #tpu.dot_dimension_numbers<[1], [0], [0], [1], [0, 0, 1, 1], [], []>} : vector<16x128xf32>, vector<128x128xf32>, vector<16x128xf32> -> vector<16x128xf32>
    %17 = arith.addf %12, %16 : vector<16x128xf32>
    %c2 = arith.constant 2 : index
    %c0_22 = arith.constant 0 : index
    %18 = vector.load %arg12[%c2, %c0_22] : memref<18x128xf32, #tpu.memory_space<vmem>>, vector<16x128xf32>
    %c2_23 = arith.constant 2 : index
    %c0_24 = arith.constant 0 : index
    %c0_25 = arith.constant 0 : index
    %19 = vector.load %arg3[%c2_23, %c0_24, %c0_25] : memref<3x128x128xf32, #tpu.memory_space<vmem>>, vector<1x128x128xf32>
    %20 = vector.shape_cast %19 : vector<1x128x128xf32> to vector<128x128xf32>
    %cst_26 = arith.constant dense<0.000000e+00> : vector<16x128xf32>
    %21 = tpu.matmul %18, %20, %cst_26 {dimension_numbers = #tpu.dot_dimension_numbers<[1], [0], [0], [1], [0, 0, 1, 1], [], []>} : vector<16x128xf32>, vector<128x128xf32>, vector<16x128xf32> -> vector<16x128xf32>
    %22 = arith.addf %17, %21 : vector<16x128xf32>
    %c0_27 = arith.constant 0 : index
    %c0_28 = arith.constant 0 : index
    %23 = vector.load %arg4[%c0_27, %c0_28] : memref<1x128xf32, #tpu.memory_space<vmem>>, vector<1x128xf32>
    %24 = vector.broadcast %23 : vector<1x128xf32> to vector<16x128xf32>
    %25 = arith.addf %22, %24 : vector<16x128xf32>
    %cst_29 = arith.constant 0.000000e+00 : f32
    %26 = vector.broadcast %cst_29 : f32 to vector<16x128xf32>
    %27 = arith.maximumf %25, %26 : vector<16x128xf32>
    %c0_30 = arith.constant 0 : index
    %c0_31 = arith.constant 0 : index
    %28 = vector.load %arg7[%c0_30, %c0_31] : memref<32x16xf32, #tpu.memory_space<vmem>>, vector<32x16xf32>
    %c0_32 = arith.constant 0 : index
    %c0_33 = arith.constant 0 : index
    %29 = vector.load %arg8[%c0_32, %c0_33] : memref<128x256xf32, #tpu.memory_space<vmem>>, vector<128x256xf32>
    %cst_34 = arith.constant dense<0.000000e+00> : vector<16x256xf32>
    %30 = tpu.matmul %27, %29, %cst_34 {dimension_numbers = #tpu.dot_dimension_numbers<[1], [0], [0], [1], [0, 0, 1, 1], [], []>} : vector<16x128xf32>, vector<128x256xf32>, vector<16x256xf32> -> vector<16x256xf32>
    %cst_35 = arith.constant dense<0.000000e+00> : vector<32x256xf32>
    %31 = tpu.matmul %28, %30, %cst_35 {dimension_numbers = #tpu.dot_dimension_numbers<[1], [0], [0], [1], [0, 0, 1, 1], [], []>} : vector<32x16xf32>, vector<16x256xf32>, vector<32x256xf32> -> vector<32x256xf32>
    %c0_36 = arith.constant 0 : index
    %c0_37 = arith.constant 0 : index
    %32 = vector.load %arg9[%c0_36, %c0_37] : memref<32x12xf32, #tpu.memory_space<vmem>>, vector<32x12xf32>
    %c0_38 = arith.constant 0 : index
    %c0_39 = arith.constant 0 : index
    %c0_40 = arith.constant 0 : index
    %33 = vector.load %arg2[%c0_38, %c0_39, %c0_40] : memref<1x12x128xf32, #tpu.memory_space<vmem>>, vector<1x12x128xf32>
    %34 = vector.shape_cast %33 : vector<1x12x128xf32> to vector<12x128xf32>
    %c0_41 = arith.constant 0 : index
    %c0_42 = arith.constant 0 : index
    %35 = vector.load %arg10[%c0_41, %c0_42] : memref<128x256xf32, #tpu.memory_space<vmem>>, vector<128x256xf32>
    %cst_43 = arith.constant dense<0.000000e+00> : vector<12x256xf32>
    %36 = tpu.matmul %34, %35, %cst_43 {dimension_numbers = #tpu.dot_dimension_numbers<[1], [0], [0], [1], [0, 0, 1, 1], [], []>} : vector<12x128xf32>, vector<128x256xf32>, vector<12x256xf32> -> vector<12x256xf32>
    %cst_44 = arith.constant dense<0.000000e+00> : vector<32x256xf32>
    %37 = tpu.matmul %32, %36, %cst_44 {dimension_numbers = #tpu.dot_dimension_numbers<[1], [0], [0], [1], [0, 0, 1, 1], [], []>} : vector<32x12xf32>, vector<12x256xf32>, vector<32x256xf32> -> vector<32x256xf32>
    %c1_45 = arith.constant 1 : index
    %c0_46 = arith.constant 0 : index
    %38 = vector.load %arg13[%c1_45, %c0_46] : memref<34x512xf32, #tpu.memory_space<vmem>>, vector<32x256xf32>
    tpu.vector_store %arg13[%c1_45, %c0_46], %37 {strides = array<i32>} : memref<34x512xf32, #tpu.memory_space<vmem>>, vector<32x256xf32>,
    %c1_47 = arith.constant 1 : index
    %c256 = arith.constant 256 : index
    %39 = vector.load %arg13[%c1_47, %c256] : memref<34x512xf32, #tpu.memory_space<vmem>>, vector<32x256xf32>
    tpu.vector_store %arg13[%c1_47, %c256], %31 {strides = array<i32>} : memref<34x512xf32, #tpu.memory_space<vmem>>, vector<32x256xf32>,
    %c0_48 = arith.constant 0 : index
    %c0_49 = arith.constant 0 : index
    %40 = vector.load %arg13[%c0_48, %c0_49] : memref<34x512xf32, #tpu.memory_space<vmem>>, vector<32x512xf32>
    %c0_50 = arith.constant 0 : index
    %c0_51 = arith.constant 0 : index
    %c0_52 = arith.constant 0 : index
    %41 = vector.load %arg5[%c0_50, %c0_51, %c0_52] : memref<3x512x256xf32, #tpu.memory_space<vmem>>, vector<1x512x256xf32>
    %42 = vector.shape_cast %41 : vector<1x512x256xf32> to vector<512x256xf32>
    %cst_53 = arith.constant dense<0.000000e+00> : vector<32x256xf32>
    %43 = tpu.matmul %40, %42, %cst_53 {dimension_numbers = #tpu.dot_dimension_numbers<[1], [0], [0], [1], [0, 0, 1, 1], [], []>} : vector<32x512xf32>, vector<512x256xf32>, vector<32x256xf32> -> vector<32x256xf32>
    %c1_54 = arith.constant 1 : index
    %c0_55 = arith.constant 0 : index
    %44 = vector.load %arg13[%c1_54, %c0_55] : memref<34x512xf32, #tpu.memory_space<vmem>>, vector<32x512xf32>
    %c1_56 = arith.constant 1 : index
    %c0_57 = arith.constant 0 : index
    %c0_58 = arith.constant 0 : index
    %45 = vector.load %arg5[%c1_56, %c0_57, %c0_58] : memref<3x512x256xf32, #tpu.memory_space<vmem>>, vector<1x512x256xf32>
    %46 = vector.shape_cast %45 : vector<1x512x256xf32> to vector<512x256xf32>
    %cst_59 = arith.constant dense<0.000000e+00> : vector<32x256xf32>
    %47 = tpu.matmul %44, %46, %cst_59 {dimension_numbers = #tpu.dot_dimension_numbers<[1], [0], [0], [1], [0, 0, 1, 1], [], []>} : vector<32x512xf32>, vector<512x256xf32>, vector<32x256xf32> -> vector<32x256xf32>
    %48 = arith.addf %43, %47 : vector<32x256xf32>
    %c2_60 = arith.constant 2 : index
    %c0_61 = arith.constant 0 : index
    %49 = vector.load %arg13[%c2_60, %c0_61] : memref<34x512xf32, #tpu.memory_space<vmem>>, vector<32x512xf32>
    %c2_62 = arith.constant 2 : index
    %c0_63 = arith.constant 0 : index
    %c0_64 = arith.constant 0 : index
    %50 = vector.load %arg5[%c2_62, %c0_63, %c0_64] : memref<3x512x256xf32, #tpu.memory_space<vmem>>, vector<1x512x256xf32>
    %51 = vector.shape_cast %50 : vector<1x512x256xf32> to vector<512x256xf32>
    %cst_65 = arith.constant dense<0.000000e+00> : vector<32x256xf32>
    %52 = tpu.matmul %49, %51, %cst_65 {dimension_numbers = #tpu.dot_dimension_numbers<[1], [0], [0], [1], [0, 0, 1, 1], [], []>} : vector<32x512xf32>, vector<512x256xf32>, vector<32x256xf32> -> vector<32x256xf32>
    %53 = arith.addf %48, %52 : vector<32x256xf32>
    %c0_66 = arith.constant 0 : index
    %c0_67 = arith.constant 0 : index
    %54 = vector.load %arg6[%c0_66, %c0_67] : memref<1x256xf32, #tpu.memory_space<vmem>>, vector<1x256xf32>
    %55 = vector.broadcast %54 : vector<1x256xf32> to vector<32x256xf32>
    %56 = arith.addf %53, %55 : vector<32x256xf32>
    %cst_68 = arith.constant 0.000000e+00 : f32
    %57 = vector.broadcast %cst_68 : f32 to vector<32x256xf32>
    %58 = arith.maximumf %56, %57 : vector<32x256xf32>
    %c0_69 = arith.constant 0 : index
    %c0_70 = arith.constant 0 : index
    %c0_71 = arith.constant 0 : index
    %59 = vector.load %arg11[%c0_69, %c0_70, %c0_71] : memref<1x32x256xf32, #tpu.memory_space<vmem>>, vector<1x32x256xf32>
    %60 = vector.shape_cast %59 : vector<1x32x256xf32> to vector<32x256xf32>
    %61 = vector.shape_cast %58 : vector<32x256xf32> to vector<1x32x256xf32>
    tpu.vector_store %arg11[%c0_69, %c0_70, %c0_71], %61 {strides = array<i32>} : memref<1x32x256xf32, #tpu.memory_space<vmem>>, vector<1x32x256xf32>,
    return
  }
  func.func @transform_0(%arg0: i32) -> (i32, i32, i32) {
    %c0_i32 = arith.constant 0 : i32
    %c0_i32_0 = arith.constant 0 : i32
    %c0_i32_1 = arith.constant 0 : i32
    return %arg0, %c0_i32, %c0_i32_0 : i32, i32, i32
  }
  func.func @transform_1(%arg0: i32) -> (i32, i32, i32) {
    %c0_i32 = arith.constant 0 : i32
    %c0_i32_0 = arith.constant 0 : i32
    %c0_i32_1 = arith.constant 0 : i32
    return %arg0, %c0_i32, %c0_i32_0 : i32, i32, i32
  }
  func.func @transform_2(%arg0: i32) -> (i32, i32, i32) {
    %c0_i32 = arith.constant 0 : i32
    %c0_i32_0 = arith.constant 0 : i32
    %c0_i32_1 = arith.constant 0 : i32
    %c0_i32_2 = arith.constant 0 : i32
    return %c0_i32, %c0_i32_0, %c0_i32_1 : i32, i32, i32
  }
  func.func @transform_3(%arg0: i32) -> (i32, i32) {
    %c0_i32 = arith.constant 0 : i32
    %c0_i32_0 = arith.constant 0 : i32
    %c0_i32_1 = arith.constant 0 : i32
    return %c0_i32, %c0_i32_0 : i32, i32
  }
  func.func @transform_4(%arg0: i32) -> (i32, i32, i32) {
    %c0_i32 = arith.constant 0 : i32
    %c0_i32_0 = arith.constant 0 : i32
    %c0_i32_1 = arith.constant 0 : i32
    %c0_i32_2 = arith.constant 0 : i32
    return %c0_i32, %c0_i32_0, %c0_i32_1 : i32, i32, i32
  }
  func.func @transform_5(%arg0: i32) -> (i32, i32) {
    %c0_i32 = arith.constant 0 : i32
    %c0_i32_0 = arith.constant 0 : i32
    %c0_i32_1 = arith.constant 0 : i32
    return %c0_i32, %c0_i32_0 : i32, i32
  }
  func.func @transform_6(%arg0: i32) -> (i32, i32) {
    %c0_i32 = arith.constant 0 : i32
    %c0_i32_0 = arith.constant 0 : i32
    %c0_i32_1 = arith.constant 0 : i32
    return %c0_i32, %c0_i32_0 : i32, i32
  }
  func.func @transform_7(%arg0: i32) -> (i32, i32) {
    %c0_i32 = arith.constant 0 : i32
    %c0_i32_0 = arith.constant 0 : i32
    %c0_i32_1 = arith.constant 0 : i32
    return %c0_i32, %c0_i32_0 : i32, i32
  }
  func.func @transform_8(%arg0: i32) -> (i32, i32) {
    %c0_i32 = arith.constant 0 : i32
    %c0_i32_0 = arith.constant 0 : i32
    %c0_i32_1 = arith.constant 0 : i32
    return %c0_i32, %c0_i32_0 : i32, i32
  }
  func.func @transform_9(%arg0: i32) -> (i32, i32) {
    %c0_i32 = arith.constant 0 : i32
    %c0_i32_0 = arith.constant 0 : i32
    %c0_i32_1 = arith.constant 0 : i32
    return %c0_i32, %c0_i32_0 : i32, i32
  }
  func.func @transform_10(%arg0: i32) -> (i32, i32, i32) {
    %c0_i32 = arith.constant 0 : i32
    %c0_i32_0 = arith.constant 0 : i32
    %c0_i32_1 = arith.constant 0 : i32
    return %arg0, %c0_i32, %c0_i32_0 : i32, i32, i32
  }
}

</mosaic_0001>

<llo_original>
// kernel: tile.18
$region0: #{tile.18}
  #allocation0 [shape = 's32[1]{0}', space=sflag, size = 0x4, scoped, tag = 'scoped memory for tile.18']
  %s0 = inlined_call_operand.vmem [shape: f32[8], index: 0, kind: input, shape index: {}]
  %s1 = inlined_call_operand.vmem [shape: f32[32,8], index: 1, kind: output, shape index: {}]
  // Predicated region
  $region2: #{tile.18} parent=0 // pred_check
    _
  $region3: #{tile.18} parent=0 // pred_check_branch
    %3 = sbr.rel (0) target = $region5
  $region4: #{tile.18} parent=0 // pred_region
    _
  $region5: #{tile.18} parent=0 // pred_fallthru
    _
  %v4 = vld [vmem:[%s0] ss:$0 sm:$0xff]
  %5 = vst [vmem:[%s1] sm:$0xff] %v4
  %s6 = scalar_lea.vmem %s1, 8
  %7 = vst [vmem:[%s6] sm:$0xff] %v4
  %s8 = scalar_lea.vmem %s1, 16
  %9 = vst [vmem:[%s8] sm:$0xff] %v4
  %s10 = scalar_lea.vmem %s1, 24
  %11 = vst [vmem:[%s10] sm:$0xff] %v4

// kernel: tile.19
$region0: #{tile.19}
  %s0 = inlined_call_operand.vmem [shape: f32[32,8], index: 0, kind: input, shape index: {}]
  %s1 = inlined_call_operand.vmem [shape: f32[1,256], index: 1, kind: output, shape index: {}]
  $region1: #{tile.19} parent=0
    #allocation0 [shape = 'u8[8192]{0}', space=vmem, size = 0x2000, scoped, tag = 'scoped mem for output reshape']
    %s2 = smov 3
    %v3 = vld [vmem:[%s0] ss:$16 sm:%s2]
    %vm4 = vcmask 64512
    %5 = vst.msk [vmem:[#allocation0] ss:$8 sm:$0x3] %vm4, %v3
    %s6 = scalar_lea.vmem %s0, 15
    %s7 = smov 3
    %v8 = vld [vmem:[%s6] ss:$16 sm:%s7]
    %9 = vrot.lane.b32.xlu0 %v8, 120
    %v10 = vpop.permute.xlu0 %9
    %vm11 = vcmask 1048512
    %12 = vst.msk [vmem:[#allocation0] ss:$8 sm:$0x3] %vm11, %v10
    %s13 = scalar_lea.vmem %s0, 14
    %s14 = smov 3
    %v15 = vld [vmem:[%s13] ss:$16 sm:%s14]
    %16 = vrot.lane.b32.xlu0 %v15, 112
    %v17 = vpop.permute.xlu0 %16
    %vm18 = vcmask 982912
    %19 = vst.msk [vmem:[#allocation0] ss:$8 sm:$0x3] %vm18, %v17
    %s20 = scalar_lea.vmem %s0, 13
    %s21 = smov 3
    %v22 = vld [vmem:[%s20] ss:$16 sm:%s21]
    %23 = vrot.lane.b32.xlu0 %v22, 104
    %v24 = vpop.permute.xlu0 %23
    %vm25 = vcmask 917312
    %26 = vst.msk [vmem:[#allocation0] ss:$8 sm:$0x3] %vm25, %v24
    %s27 = scalar_lea.vmem %s0, 12
    %s28 = smov 3
    %v29 = vld [vmem:[%s27] ss:$16 sm:%s28]
    %30 = vrot.lane.b32.xlu0 %v29, 96
    %v31 = vpop.permute.xlu0 %30
    %vm32 = vcmask 851712
    %33 = vst.msk [vmem:[#allocation0] ss:$8 sm:$0x3] %vm32, %v31
    %s34 = scalar_lea.vmem %s0, 11
    %s35 = smov 3
    %v36 = vld [vmem:[%s34] ss:$16 sm:%s35]
    %37 = vrot.lane.b32.xlu0 %v36, 88
    %v38 = vpop.permute.xlu0 %37
    %vm39 = vcmask 786112
    %40 = vst.msk [vmem:[#allocation0] ss:$8 sm:$0x3] %vm39, %v38
    %s41 = scalar_lea.vmem %s0, 10
    %s42 = smov 3
    %v43 = vld [vmem:[%s41] ss:$16 sm:%s42]
    %44 = vrot.lane.b32.xlu0 %v43, 80
    %v45 = vpop.permute.xlu0 %44
    %vm46 = vcmask 720512
    %47 = vst.msk [vmem:[#allocation0] ss:$8 sm:$0x3] %vm46, %v45
    %s48 = scalar_lea.vmem %s0, 9
    %s49 = smov 3
    %v50 = vld [vmem:[%s48] ss:$16 sm:%s49]
    %51 = vrot.lane.b32.xlu0 %v50, 72
    %v52 = vpop.permute.xlu0 %51
    %vm53 = vcmask 654912
    %54 = vst.msk [vmem:[#allocation0] ss:$8 sm:$0x3] %vm53, %v52
    %s55 = scalar_lea.vmem %s0, 8
    %s56 = smov 3
    %v57 = vld [vmem:[%s55] ss:$16 sm:%s56]
    %58 = vrot.lane.b32.xlu0 %v57, 64
    %v59 = vpop.permute.xlu0 %58
    %vm60 = vcmask 589312
    %61 = vst.msk [vmem:[#allocation0] ss:$8 sm:$0x3] %vm60, %v59
    %s62 = scalar_lea.vmem %s0, 7
    %s63 = smov 3
    %v64 = vld [vmem:[%s62] ss:$16 sm:%s63]
    %65 = vrot.lane.b32.xlu0 %v64, 56
    %v66 = vpop.permute.xlu0 %65
    %vm67 = vcmask 523712
    %68 = vst.msk [vmem:[#allocation0] ss:$8 sm:$0x3] %vm67, %v66
    %s69 = scalar_lea.vmem %s0, 6
    %s70 = smov 3
    %v71 = vld [vmem:[%s69] ss:$16 sm:%s70]
    %72 = vrot.lane.b32.xlu0 %v71, 48
    %v73 = vpop.permute.xlu0 %72
    %vm74 = vcmask 458112
    %75 = vst.msk [vmem:[#allocation0] ss:$8 sm:$0x3] %vm74, %v73
    %s76 = scalar_lea.vmem %s0, 5
    %s77 = smov 3
    %v78 = vld [vmem:[%s76] ss:$16 sm:%s77]
    %79 = vrot.lane.b32.xlu0 %v78, 40
    %v80 = vpop.permute.xlu0 %79
    %vm81 = vcmask 392512
    %82 = vst.msk [vmem:[#allocation0] ss:$8 sm:$0x3] %vm81, %v80
    %s83 = scalar_lea.vmem %s0, 4
    %s84 = smov 3
    %v85 = vld [vmem:[%s83] ss:$16 sm:%s84]
    %86 = vrot.lane.b32.xlu0 %v85, 32
    %v87 = vpop.permute.xlu0 %86
    %vm88 = vcmask 326912
    %89 = vst.msk [vmem:[#allocation0] ss:$8 sm:$0x3] %vm88, %v87
    %s90 = scalar_lea.vmem %s0, 3
    %s91 = smov 3
    %v92 = vld [vmem:[%s90] ss:$16 sm:%s91]
    %93 = vrot.lane.b32.xlu0 %v92, 24
    %v94 = vpop.permute.xlu0 %93
    %vm95 = vcmask 261312
    %96 = vst.msk [vmem:[#allocation0] ss:$8 sm:$0x3] %vm95, %v94
    %s97 = scalar_lea.vmem %s0, 2
    %s98 = smov 3
    %v99 = vld [vmem:[%s97] ss:$16 sm:%s98]
    %100 = vrot.lane.b32.xlu0 %v99, 16
    %v101 = vpop.permute.xlu0 %100
    %vm102 = vcmask 195712
    %103 = vst.msk [vmem:[#allocation0] ss:$8 sm:$0x3] %vm102, %v101
    %s104 = scalar_lea.vmem %s0, 1
    %s105 = smov 3
    %v106 = vld [vmem:[%s104] ss:$16 sm:%s105]
    %107 = vrot.lane.b32.xlu0 %v106, 8
    %v108 = vpop.permute.xlu0 %107
    %vm109 = vcmask 130112
    %110 = vst.msk [vmem:[#allocation0] ss:$8 sm:$0x3] %vm109, %v108
    %s112 = ssub.s32 2, 1
    %v113 = vld [vmem:[#allocation0] sm:%s112]
    %s115 = ssub.s32 2, 1
    %116 = vst [vmem:[%s1] sm:%s115] %v113
    %s117 = scalar_lea.vmem [#allocation0], 8
    %v118 = vld [vmem:[%s117] sm:%s112]
    %s120 = ssub.s32 2, 1
    %s121 = scalar_lea.vmem %s1, 1
    %122 = vst [vmem:[%s121] sm:%s120] %v118

// kernel: tile.13
$region0: #{tile.13}
  #allocation0 [shape = 's32[1]{0}', space=sflag, size = 0x4, scoped, tag = 'scoped memory for tile.13']
  %s0 = inlined_call_operand.vmem [shape: f32[8], index: 0, kind: input, shape index: {}]
  %s1 = inlined_call_operand.vmem [shape: f32[16,8], index: 1, kind: output, shape index: {}]
  // Predicated region
  $region2: #{tile.13} parent=0 // pred_check
    _
  $region3: #{tile.13} parent=0 // pred_check_branch
    %3 = sbr.rel (0) target = $region5
  $region4: #{tile.13} parent=0 // pred_region
    _
  $region5: #{tile.13} parent=0 // pred_fallthru
    _
  %v4 = vld [vmem:[%s0] ss:$0 sm:$0xff]
  %5 = vst [vmem:[%s1] sm:$0xff] %v4
  %s6 = scalar_lea.vmem %s1, 8
  %7 = vst [vmem:[%s6] sm:$0xff] %v4

// kernel: tile.14
$region0: #{tile.14}
  %s0 = inlined_call_operand.vmem [shape: f32[16,8], index: 0, kind: input, shape index: {}]
  %s1 = inlined_call_operand.vmem [shape: f32[1,128], index: 1, kind: output, shape index: {}]
  $region1: #{tile.14} parent=0
    #allocation0 [shape = 'u8[4096]{0}', space=vmem, size = 0x1000, scoped, tag = 'scoped mem for output reshape']
    %v2 = vld [vmem:[%s0] sm:$0x1]
    %vm3 = vcmask 64512
    %4 = vst.msk [vmem:[#allocation0] sm:$0x1] %vm3, %v2
    %s5 = scalar_lea.vmem %s0, 15
    %v6 = vld [vmem:[%s5] sm:$0x1]
    %7 = vrot.lane.b32.xlu0 %v6, 120
    %v8 = vpop.permute.xlu0 %7
    %vm9 = vcmask 1048512
    %10 = vst.msk [vmem:[#allocation0] sm:$0x1] %vm9, %v8
    %s11 = scalar_lea.vmem %s0, 14
    %v12 = vld [vmem:[%s11] sm:$0x1]
    %13 = vrot.lane.b32.xlu0 %v12, 112
    %v14 = vpop.permute.xlu0 %13
    %vm15 = vcmask 982912
    %16 = vst.msk [vmem:[#allocation0] sm:$0x1] %vm15, %v14
    %s17 = scalar_lea.vmem %s0, 13
    %v18 = vld [vmem:[%s17] sm:$0x1]
    %19 = vrot.lane.b32.xlu0 %v18, 104
    %v20 = vpop.permute.xlu0 %19
    %vm21 = vcmask 917312
    %22 = vst.msk [vmem:[#allocation0] sm:$0x1] %vm21, %v20
    %s23 = scalar_lea.vmem %s0, 12
    %v24 = vld [vmem:[%s23] sm:$0x1]
    %25 = vrot.lane.b32.xlu0 %v24, 96
    %v26 = vpop.permute.xlu0 %25
    %vm27 = vcmask 851712
    %28 = vst.msk [vmem:[#allocation0] sm:$0x1] %vm27, %v26
    %s29 = scalar_lea.vmem %s0, 11
    %v30 = vld [vmem:[%s29] sm:$0x1]
    %31 = vrot.lane.b32.xlu0 %v30, 88
    %v32 = vpop.permute.xlu0 %31
    %vm33 = vcmask 786112
    %34 = vst.msk [vmem:[#allocation0] sm:$0x1] %vm33, %v32
    %s35 = scalar_lea.vmem %s0, 10
    %v36 = vld [vmem:[%s35] sm:$0x1]
    %37 = vrot.lane.b32.xlu0 %v36, 80
    %v38 = vpop.permute.xlu0 %37
    %vm39 = vcmask 720512
    %40 = vst.msk [vmem:[#allocation0] sm:$0x1] %vm39, %v38
    %s41 = scalar_lea.vmem %s0, 9
    %v42 = vld [vmem:[%s41] sm:$0x1]
    %43 = vrot.lane.b32.xlu0 %v42, 72
    %v44 = vpop.permute.xlu0 %43
    %vm45 = vcmask 654912
    %46 = vst.msk [vmem:[#allocation0] sm:$0x1] %vm45, %v44
    %s47 = scalar_lea.vmem %s0, 8
    %v48 = vld [vmem:[%s47] sm:$0x1]
    %49 = vrot.lane.b32.xlu0 %v48, 64
    %v50 = vpop.permute.xlu0 %49
    %vm51 = vcmask 589312
    %52 = vst.msk [vmem:[#allocation0] sm:$0x1] %vm51, %v50
    %s53 = scalar_lea.vmem %s0, 7
    %v54 = vld [vmem:[%s53] sm:$0x1]
    %55 = vrot.lane.b32.xlu0 %v54, 56
    %v56 = vpop.permute.xlu0 %55
    %vm57 = vcmask 523712
    %58 = vst.msk [vmem:[#allocation0] sm:$0x1] %vm57, %v56
    %s59 = scalar_lea.vmem %s0, 6
    %v60 = vld [vmem:[%s59] sm:$0x1]
    %61 = vrot.lane.b32.xlu0 %v60, 48
    %v62 = vpop.permute.xlu0 %61
    %vm63 = vcmask 458112
    %64 = vst.msk [vmem:[#allocation0] sm:$0x1] %vm63, %v62
    %s65 = scalar_lea.vmem %s0, 5
    %v66 = vld [vmem:[%s65] sm:$0x1]
    %67 = vrot.lane.b32.xlu0 %v66, 40
    %v68 = vpop.permute.xlu0 %67
    %vm69 = vcmask 392512
    %70 = vst.msk [vmem:[#allocation0] sm:$0x1] %vm69, %v68
    %s71 = scalar_lea.vmem %s0, 4
    %v72 = vld [vmem:[%s71] sm:$0x1]
    %73 = vrot.lane.b32.xlu0 %v72, 32
    %v74 = vpop.permute.xlu0 %73
    %vm75 = vcmask 326912
    %76 = vst.msk [vmem:[#allocation0] sm:$0x1] %vm75, %v74
    %s77 = scalar_lea.vmem %s0, 3
    %v78 = vld [vmem:[%s77] sm:$0x1]
    %79 = vrot.lane.b32.xlu0 %v78, 24
    %v80 = vpop.permute.xlu0 %79
    %vm81 = vcmask 261312
    %82 = vst.msk [vmem:[#allocation0] sm:$0x1] %vm81, %v80
    %s83 = scalar_lea.vmem %s0, 2
    %v84 = vld [vmem:[%s83] sm:$0x1]
    %85 = vrot.lane.b32.xlu0 %v84, 16
    %v86 = vpop.permute.xlu0 %85
    %vm87 = vcmask 195712
    %88 = vst.msk [vmem:[#allocation0] sm:$0x1] %vm87, %v86
    %s89 = scalar_lea.vmem %s0, 1
    %v90 = vld [vmem:[%s89] sm:$0x1]
    %91 = vrot.lane.b32.xlu0 %v90, 8
    %v92 = vpop.permute.xlu0 %91
    %vm93 = vcmask 130112
    %94 = vst.msk [vmem:[#allocation0] sm:$0x1] %vm93, %v92
    %s96 = ssub.s32 2, 1
    %v97 = vld [vmem:[#allocation0] sm:%s96]
    %s99 = ssub.s32 2, 1
    %100 = vst [vmem:[%s1] sm:%s99] %v97

// kernel: _lambda_.1
$region0: #{_lambda_.1}
  #allocation0 [shape = 'u32[]', space=smem, size = 0x4, offset = 0x4, fixed_abs, tag = 'smem constant byte address 0x4 - core index']
  #allocation1 [shape = 'u32[72,128]{1,0:T(1,128)}', space=vmem, size = 0x9000, scoped, tag = 'internal scratch']
  #allocation2 [shape = 'f32[18,128]{1,0:T(8,128)}', space=vmem, size = 0x3000, scoped, tag = 'scratch operand']
  #allocation3 [shape = 'f32[34,512]{1,0:T(8,128)}', space=vmem, size = 0x14000, scoped, tag = 'scratch operand']
  %s0 = inlined_call_operand.vmem [shape: f32[2,16,128], index: 0, kind: input, shape index: {}]
  %s1 = inlined_call_operand.vmem [shape: f32[2,12,128], index: 1, kind: input, shape index: {}]
  %s2 = inlined_call_operand.vmem [shape: f32[3,128,128], index: 2, kind: input, shape index: {}]
  %s3 = inlined_call_operand.vmem [shape: f32[1,128], index: 3, kind: input, shape index: {}]
  %s4 = inlined_call_operand.vmem [shape: f32[3,512,256], index: 4, kind: input, shape index: {}]
  %s5 = inlined_call_operand.vmem [shape: f32[1,256], index: 5, kind: input, shape index: {}]
  %s6 = inlined_call_operand.vmem [shape: f32[32,16], index: 6, kind: input, shape index: {}]
  %s7 = inlined_call_operand.vmem [shape: f32[128,256], index: 7, kind: input, shape index: {}]
  %s8 = inlined_call_operand.vmem [shape: f32[32,12], index: 8, kind: input, shape index: {}]
  %s9 = inlined_call_operand.vmem [shape: f32[128,256], index: 9, kind: input, shape index: {}]
  %s10 = inlined_call_operand.vmem [shape: f32[2,32,256], index: 10, kind: output, shape index: {}]
  %s11 = sld [smem:[#allocation0]]
  $region73: #{_lambda_.1} parent=0
    _
  %s13 = ssub.s32 1, %s11
  %s14 = scalar_select 0, %s13, %s11
  loop: start=0, step=1, limit=4
  $region2: #{_lambda_.1} parent=0 // loop_pre_header
    _
  $region3: #{_lambda_.1} parent=0 // loop_header
    %s16 = sphi 0, %s20
    %p17 = scmp.ge.s32.totalorder %s16, 4
    %s26 = sphi 0, %s28
    %s29 = sphi 0, %s26
    %s30 = sphi 0, %s29
    %s46 = sphi 0, %s30
    %s52 = sphi 0, %s54
    %s55 = sphi 0, %s52
    %s56 = sphi 0, %s55
    %s72 = sphi 0, %s56
    %s76 = sphi 0, %s76
    %s78 = sphi 0, %s76
    %s79 = sphi 0, %s78
    %s93 = sphi 0, %s79
    %s97 = sphi 0, %s97
    %s99 = sphi 0, %s97
    %s100 = sphi 0, %s99
    %s114 = sphi 0, %s100
    %s118 = sphi 0, %s118
    %s120 = sphi 0, %s118
    %s121 = sphi 0, %s120
    %s135 = sphi 0, %s121
    %s139 = sphi 0, %s139
    %s141 = sphi 0, %s139
    %s142 = sphi 0, %s141
    %s156 = sphi 0, %s142
    %s160 = sphi 0, %s160
    %s162 = sphi 0, %s160
    %s163 = sphi 0, %s162
    %s177 = sphi 0, %s163
    %s181 = sphi 0, %s181
    %s183 = sphi 0, %s181
    %s184 = sphi 0, %s183
    %s198 = sphi 0, %s184
    %s202 = sphi 0, %s202
    %s204 = sphi 0, %s202
    %s205 = sphi 0, %s204
    %s219 = sphi 0, %s205
    %s223 = sphi 0, %s223
    %s225 = sphi 0, %s223
    %s226 = sphi 0, %s225
    %s240 = sphi 0, %s226
    %s246 = sphi 0, %s248
    %s249 = sphi 0, %s246
    %s250 = sphi 0, %s249
    %s266 = sphi 0, %s250
  $region4: #{_lambda_.1} parent=0 // loop_header_branch
    %19 = sbr.rel (%p17) target = $region8
  $region5: #{_lambda_.1} parent=0 // loop_body
    %s21 = ssub.s32 %s16, 1
    %s22 = ssub.s32 %s16, 2
    %s23 = sadd.s32 %s16, 1
    %s24 = ssub.s32 %s16, %s23
    %p25 = scmp.eq.s32.totalorder %s24, 0
    %s27 = sadd.s32 %s26, 1
    %s28 = scalar_select %p25, %s26, %s27
    %p31 = pneg %p25
    %p32 = scmp.eq.s32.totalorder %s16, 1
    %p33 = por %p31, %p32
    %p34 = scmp.ne.s32.totalorder %s26, %s29
    %p35 = scmp.eq.s32.totalorder %s16, 0
    %p36 = por %p34, %p35
    %p37 = scmp.ne.s32.totalorder %s26, %s29
    %p38 = scmp.eq.s32.totalorder %s21, 1
    %p39 = por %p37, %p38
    %p40 = scmp.ne.s32.totalorder %s29, %s30
    %p41 = scmp.eq.s32.totalorder %s21, 0
    %p42 = por %p40, %p41
    %p43 = scmp.ne.s32.totalorder %s29, %s30
    %p44 = scmp.eq.s32.totalorder %s22, 1
    %p45 = por %p43, %p44
    %p47 = scmp.ne.s32.totalorder %s30, %s46
    %p48 = scmp.eq.s32.totalorder %s22, 0
    %p49 = por %p47, %p48
    %s50 = ssub.s32 %s16, %s23
    %p51 = scmp.eq.s32.totalorder %s50, 0
    %s53 = sadd.s32 %s52, 1
    %s54 = scalar_select %p51, %s52, %s53
    %p57 = pneg %p51
    %p58 = scmp.eq.s32.totalorder %s16, 1
    %p59 = por %p57, %p58
    %p60 = scmp.ne.s32.totalorder %s52, %s55
    %p61 = scmp.eq.s32.totalorder %s16, 0
    %p62 = por %p60, %p61
    %p63 = scmp.ne.s32.totalorder %s52, %s55
    %p64 = scmp.eq.s32.totalorder %s21, 1
    %p65 = por %p63, %p64
    %p66 = scmp.ne.s32.totalorder %s55, %s56
    %p67 = scmp.eq.s32.totalorder %s21, 0
    %p68 = por %p66, %p67
    %p69 = scmp.ne.s32.totalorder %s55, %s56
    %p70 = scmp.eq.s32.totalorder %s22, 1
    %p71 = por %p69, %p70
    %p73 = scmp.ne.s32.totalorder %s56, %s72
    %p74 = scmp.eq.s32.totalorder %s22, 0
    %p75 = por %p73, %p74
    %s77 = sadd.s32 %s76, 1
    %p80 = scmp.eq.s32.totalorder %s16, 1
    %p81 = scmp.ne.s32.totalorder %s76, %s78
    %p82 = scmp.eq.s32.totalorder %s16, 0
    %p83 = por %p81, %p82
    %p84 = scmp.ne.s32.totalorder %s76, %s78
    %p85 = scmp.eq.s32.totalorder %s21, 1
    %p86 = por %p84, %p85
    %p87 = scmp.ne.s32.totalorder %s78, %s79
    %p88 = scmp.eq.s32.totalorder %s21, 0
    %p89 = por %p87, %p88
    %p90 = scmp.ne.s32.totalorder %s78, %s79
    %p91 = scmp.eq.s32.totalorder %s22, 1
    %p92 = por %p90, %p91
    %p94 = scmp.ne.s32.totalorder %s79, %s93
    %p95 = scmp.eq.s32.totalorder %s22, 0
    %p96 = por %p94, %p95
    %s98 = sadd.s32 %s97, 1
    %p101 = scmp.eq.s32.totalorder %s16, 1
    %p102 = scmp.ne.s32.totalorder %s97, %s99
    %p103 = scmp.eq.s32.totalorder %s16, 0
    %p104 = por %p102, %p103
    %p105 = scmp.ne.s32.totalorder %s97, %s99
    %p106 = scmp.eq.s32.totalorder %s21, 1
    %p107 = por %p105, %p106
    %p108 = scmp.ne.s32.totalorder %s99, %s100
    %p109 = scmp.eq.s32.totalorder %s21, 0
    %p110 = por %p108, %p109
    %p111 = scmp.ne.s32.totalorder %s99, %s100
    %p112 = scmp.eq.s32.totalorder %s22, 1
    %p113 = por %p111, %p112
    %p115 = scmp.ne.s32.totalorder %s100, %s114
    %p116 = scmp.eq.s32.totalorder %s22, 0
    %p117 = por %p115, %p116
    %s119 = sadd.s32 %s118, 1
    %p122 = scmp.eq.s32.totalorder %s16, 1
    %p123 = scmp.ne.s32.totalorder %s118, %s120
    %p124 = scmp.eq.s32.totalorder %s16, 0
    %p125 = por %p123, %p124
    %p126 = scmp.ne.s32.totalorder %s118, %s120
    %p127 = scmp.eq.s32.totalorder %s21, 1
    %p128 = por %p126, %p127
    %p129 = scmp.ne.s32.totalorder %s120, %s121
    %p130 = scmp.eq.s32.totalorder %s21, 0
    %p131 = por %p129, %p130
    %p132 = scmp.ne.s32.totalorder %s120, %s121
    %p133 = scmp.eq.s32.totalorder %s22, 1
    %p134 = por %p132, %p133
    %p136 = scmp.ne.s32.totalorder %s121, %s135
    %p137 = scmp.eq.s32.totalorder %s22, 0
    %p138 = por %p136, %p137
    %s140 = sadd.s32 %s139, 1
    %p143 = scmp.eq.s32.totalorder %s16, 1
    %p144 = scmp.ne.s32.totalorder %s139, %s141
    %p145 = scmp.eq.s32.totalorder %s16, 0
    %p146 = por %p144, %p145
    %p147 = scmp.ne.s32.totalorder %s139, %s141
    %p148 = scmp.eq.s32.totalorder %s21, 1
    %p149 = por %p147, %p148
    %p150 = scmp.ne.s32.totalorder %s141, %s142
    %p151 = scmp.eq.s32.totalorder %s21, 0
    %p152 = por %p150, %p151
    %p153 = scmp.ne.s32.totalorder %s141, %s142
    %p154 = scmp.eq.s32.totalorder %s22, 1
    %p155 = por %p153, %p154
    %p157 = scmp.ne.s32.totalorder %s142, %s156
    %p158 = scmp.eq.s32.totalorder %s22, 0
    %p159 = por %p157, %p158
    %s161 = sadd.s32 %s160, 1
    %p164 = scmp.eq.s32.totalorder %s16, 1
    %p165 = scmp.ne.s32.totalorder %s160, %s162
    %p166 = scmp.eq.s32.totalorder %s16, 0
    %p167 = por %p165, %p166
    %p168 = scmp.ne.s32.totalorder %s160, %s162
    %p169 = scmp.eq.s32.totalorder %s21, 1
    %p170 = por %p168, %p169
    %p171 = scmp.ne.s32.totalorder %s162, %s163
    %p172 = scmp.eq.s32.totalorder %s21, 0
    %p173 = por %p171, %p172
    %p174 = scmp.ne.s32.totalorder %s162, %s163
    %p175 = scmp.eq.s32.totalorder %s22, 1
    %p176 = por %p174, %p175
    %p178 = scmp.ne.s32.totalorder %s163, %s177
    %p179 = scmp.eq.s32.totalorder %s22, 0
    %p180 = por %p178, %p179
    %s182 = sadd.s32 %s181, 1
    %p185 = scmp.eq.s32.totalorder %s16, 1
    %p186 = scmp.ne.s32.totalorder %s181, %s183
    %p187 = scmp.eq.s32.totalorder %s16, 0
    %p188 = por %p186, %p187
    %p189 = scmp.ne.s32.totalorder %s181, %s183
    %p190 = scmp.eq.s32.totalorder %s21, 1
    %p191 = por %p189, %p190
    %p192 = scmp.ne.s32.totalorder %s183, %s184
    %p193 = scmp.eq.s32.totalorder %s21, 0
    %p194 = por %p192, %p193
    %p195 = scmp.ne.s32.totalorder %s183, %s184
    %p196 = scmp.eq.s32.totalorder %s22, 1
    %p197 = por %p195, %p196
    %p199 = scmp.ne.s32.totalorder %s184, %s198
    %p200 = scmp.eq.s32.totalorder %s22, 0
    %p201 = por %p199, %p200
    %s203 = sadd.s32 %s202, 1
    %p206 = scmp.eq.s32.totalorder %s16, 1
    %p207 = scmp.ne.s32.totalorder %s202, %s204
    %p208 = scmp.eq.s32.totalorder %s16, 0
    %p209 = por %p207, %p208
    %p210 = scmp.ne.s32.totalorder %s202, %s204
    %p211 = scmp.eq.s32.totalorder %s21, 1
    %p212 = por %p210, %p211
    %p213 = scmp.ne.s32.totalorder %s204, %s205
    %p214 = scmp.eq.s32.totalorder %s21, 0
    %p215 = por %p213, %p214
    %p216 = scmp.ne.s32.totalorder %s204, %s205
    %p217 = scmp.eq.s32.totalorder %s22, 1
    %p218 = por %p216, %p217
    %p220 = scmp.ne.s32.totalorder %s205, %s219
    %p221 = scmp.eq.s32.totalorder %s22, 0
    %p222 = por %p220, %p221
    %s224 = sadd.s32 %s223, 1
    %p227 = scmp.eq.s32.totalorder %s16, 1
    %p228 = scmp.ne.s32.totalorder %s223, %s225
    %p229 = scmp.eq.s32.totalorder %s16, 0
    %p230 = por %p228, %p229
    %p231 = scmp.ne.s32.totalorder %s223, %s225
    %p232 = scmp.eq.s32.totalorder %s21, 1
    %p233 = por %p231, %p232
    %p234 = scmp.ne.s32.totalorder %s225, %s226
    %p235 = scmp.eq.s32.totalorder %s21, 0
    %p236 = por %p234, %p235
    %p237 = scmp.ne.s32.totalorder %s225, %s226
    %p238 = scmp.eq.s32.totalorder %s22, 1
    %p239 = por %p237, %p238
    %p241 = scmp.ne.s32.totalorder %s226, %s240
    %p242 = scmp.eq.s32.totalorder %s22, 0
    %p243 = por %p241, %p242
    %s244 = ssub.s32 %s16, %s23
    %p245 = scmp.eq.s32.totalorder %s244, 0
    %s247 = sadd.s32 %s246, 1
    %s248 = scalar_select %p245, %s246, %s247
    %p251 = pneg %p245
    %p252 = scmp.eq.s32.totalorder %s16, 1
    %p253 = por %p251, %p252
    %p254 = scmp.ne.s32.totalorder %s246, %s249
    %p255 = scmp.eq.s32.totalorder %s16, 0
    %p256 = por %p254, %p255
    %p257 = scmp.ne.s32.totalorder %s246, %s249
    %p258 = scmp.eq.s32.totalorder %s21, 1
    %p259 = por %p257, %p258
    %p260 = scmp.ne.s32.totalorder %s249, %s250
    %p261 = scmp.eq.s32.totalorder %s21, 0
    %p262 = por %p260, %p261
    %p263 = scmp.ne.s32.totalorder %s249, %s250
    %p264 = scmp.eq.s32.totalorder %s22, 1
    %p265 = por %p263, %p264
    %p267 = scmp.ne.s32.totalorder %s250, %s266
    %p268 = scmp.eq.s32.totalorder %s22, 0
    %p269 = por %p267, %p268
    %p270 = scmp.le.s32.totalorder 1, %s16
    %p271 = scmp.lt.s32.totalorder %s16, 3
    %p272 = pnand %p270, %p271
    %p273 = pneg %p272
    // Predicated region
    $region9: #{_lambda_.1} parent=5 // pred_check
      _
    $region10: #{_lambda_.1} parent=5 // pred_check_branch
      %275 = sbr.rel (%p272) target = $region12
    $region11: #{_lambda_.1} parent=5 // pred_region
      %s276 = ssub.s32 %s16, 1
      // Predicated region
      $region13: #{_lambda_.1} parent=11 // pred_check
        %p277 = pneg %p89
      $region14: #{_lambda_.1} parent=11 // pred_check_branch
        %279 = sbr.rel (%p277) target = $region16
      $region15: #{_lambda_.1} parent=11 // pred_region
        _
      $region16: #{_lambda_.1} parent=11 // pred_fallthru
        _
      // Predicated region
      $region17: #{_lambda_.1} parent=11 // pred_check
        %p280 = pneg %p110
      $region18: #{_lambda_.1} parent=11 // pred_check_branch
        %282 = sbr.rel (%p280) target = $region20
      $region19: #{_lambda_.1} parent=11 // pred_region
        _
      $region20: #{_lambda_.1} parent=11 // pred_fallthru
        _
      // Predicated region
      $region21: #{_lambda_.1} parent=11 // pred_check
        %p283 = pneg %p131
      $region22: #{_lambda_.1} parent=11 // pred_check_branch
        %285 = sbr.rel (%p283) target = $region24
      $region23: #{_lambda_.1} parent=11 // pred_region
        _
      $region24: #{_lambda_.1} parent=11 // pred_fallthru
        _
      // Predicated region
      $region25: #{_lambda_.1} parent=11 // pred_check
        %p286 = pneg %p152
      $region26: #{_lambda_.1} parent=11 // pred_check_branch
        %288 = sbr.rel (%p286) target = $region28
      $region27: #{_lambda_.1} parent=11 // pred_region
        _
      $region28: #{_lambda_.1} parent=11 // pred_fallthru
        _
      // Predicated region
      $region29: #{_lambda_.1} parent=11 // pred_check
        %p289 = pneg %p173
      $region30: #{_lambda_.1} parent=11 // pred_check_branch
        %291 = sbr.rel (%p289) target = $region32
      $region31: #{_lambda_.1} parent=11 // pred_region
        _
      $region32: #{_lambda_.1} parent=11 // pred_fallthru
        _
      // Predicated region
      $region33: #{_lambda_.1} parent=11 // pred_check
        %p292 = pneg %p194
      $region34: #{_lambda_.1} parent=11 // pred_check_branch
        %294 = sbr.rel (%p292) target = $region36
      $region35: #{_lambda_.1} parent=11 // pred_region
        _
      $region36: #{_lambda_.1} parent=11 // pred_fallthru
        _
      // Predicated region
      $region37: #{_lambda_.1} parent=11 // pred_check
        %p295 = pneg %p215
      $region38: #{_lambda_.1} parent=11 // pred_check_branch
        %297 = sbr.rel (%p295) target = $region40
      $region39: #{_lambda_.1} parent=11 // pred_region
        _
      $region40: #{_lambda_.1} parent=11 // pred_fallthru
        _
      // Predicated region
      $region41: #{_lambda_.1} parent=11 // pred_check
        %p298 = pneg %p236
      $region42: #{_lambda_.1} parent=11 // pred_check_branch
        %300 = sbr.rel (%p298) target = $region44
      $region43: #{_lambda_.1} parent=11 // pred_region
        _
      $region44: #{_lambda_.1} parent=11 // pred_fallthru
        _
    $region12: #{_lambda_.1} parent=5 // pred_fallthru
      _
    %p301 = scmp.lt.s32.totalorder %s16, 2
    // Predicated region
    $region45: #{_lambda_.1} parent=5 // pred_check
      %p302 = pneg %p301
    $region46: #{_lambda_.1} parent=5 // pred_check_branch
      %304 = sbr.rel (%p302) target = $region48
    $region47: #{_lambda_.1} parent=5 // pred_region
      // Predicated region
      $region49: #{_lambda_.1} parent=47 // pred_check
        %p305 = pneg %p36
      $region50: #{_lambda_.1} parent=47 // pred_check_branch
        %307 = sbr.rel (%p305) target = $region52
      $region51: #{_lambda_.1} parent=47 // pred_region
        %p308 = scmp.lt.s32.totalorder %s16, 1
        %s309 = scalar_select %p308, %s16, 1
        %s310 = smul.addr %s309, 2
        %s311 = smul.addr %s310, 8
        %s312 = scalar_lea.vmem %s0, %s311
      $region52: #{_lambda_.1} parent=47 // pred_fallthru
        _
      // Predicated region
      $region53: #{_lambda_.1} parent=47 // pred_check
        %p313 = pneg %p62
      $region54: #{_lambda_.1} parent=47 // pred_check_branch
        %315 = sbr.rel (%p313) target = $region56
      $region55: #{_lambda_.1} parent=47 // pred_region
        %p316 = scmp.lt.s32.totalorder %s16, 1
        %s317 = scalar_select %p316, %s16, 1
        %s318 = smul.addr %s317, 2
        %s319 = smul.addr %s318, 8
        %s320 = scalar_lea.vmem %s1, %s319
      $region56: #{_lambda_.1} parent=47 // pred_fallthru
        _
    $region48: #{_lambda_.1} parent=5 // pred_fallthru
      _
    %p321 = scmp.le.s32.totalorder 1, %s16
    %p322 = scmp.lt.s32.totalorder %s16, 3
    %p323 = pnand %p321, %p322
    %p324 = pneg %p323
    // Predicated region
    $region57: #{_lambda_.1} parent=5 // pred_check
      _
    $region58: #{_lambda_.1} parent=5 // pred_check_branch
      %326 = sbr.rel (%p323) target = $region60
    $region59: #{_lambda_.1} parent=5 // pred_region
      %s327 = ssub.s32 %s16, 1
      %p328 = scmp.lt.s32.totalorder %s21, 1
      %s329 = scalar_select %p328, %s21, 1
      %s330 = smul.addr %s329, 2
      %s331 = smul.addr %s330, 8
      %s332 = scalar_lea.vmem %s0, %s331
      %p333 = pneg %p42
      %p334 = pneg %p39
      %p335 = scmp.lt.s32.totalorder %s21, 1
      %s336 = scalar_select %p335, %s21, 1
      %s337 = smul.addr %s336, 2
      %s338 = smul.addr %s337, 8
      %s339 = scalar_lea.vmem %s1, %s338
      %p340 = pneg %p68
      %p341 = pneg %p65
      %p342 = pneg %p89
      %p343 = pneg %p86
      %p344 = pneg %p110
      %p345 = pneg %p107
      %p346 = pneg %p131
      %p347 = pneg %p128
      %p348 = pneg %p152
      %p349 = pneg %p149
      %p350 = pneg %p173
      %p351 = pneg %p170
      %p352 = pneg %p194
      %p353 = pneg %p191
      %p354 = pneg %p215
      %p355 = pneg %p212
      %p356 = pneg %p236
      %p357 = pneg %p233
      %p358 = pneg %p262
      %p359 = pneg %p259
      %p360 = scmp.lt.s32.totalorder %s21, 1
      %s361 = scalar_select %p360, %s21, 1
      %s362 = smul.addr %s361, 8
      %s363 = smul.addr %s362, 8
      %s364 = scalar_lea.vmem %s10, %s363
      %p365 = scmp.lt.s32.totalorder %s21, 1
      %s366 = scalar_select %p365, %s21, 1
      %s367 = smul.addr %s366, 2
      %s368 = smul.addr %s367, 8
      %s369 = scalar_lea.vmem %s0, %s368
      %p370 = scmp.lt.s32.totalorder %s21, 1
      %s371 = scalar_select %p370, %s21, 1
      %s372 = smul.addr %s371, 2
      %s373 = smul.addr %s372, 8
      %s374 = scalar_lea.vmem %s1, %s373
      %p375 = scmp.lt.s32.totalorder %s21, 1
      %s376 = scalar_select %p375, %s21, 1
      %s377 = smul.addr %s376, 8
      %s378 = smul.addr %s377, 8
      %s379 = scalar_lea.vmem %s10, %s378
      %380 = vst [vmem:[#allocation2] sm:$0x1] 0.0
      %381 = vst [vmem:[#allocation2 + $0x11] sm:$0x1] 0.0
      %v382 = vlaneseq
      %vm383 = vcmp.ge.s32.totalorder %v382, 0
      %vm384 = vcmp.lt.s32.totalorder %v382, 512
      %vm385 = vmand %vm383, %vm384
      %386 = vst.msk [vmem:[#allocation3] ss:$8 sm:$0xf] %vm385, 0.0
      %387 = vst.msk [vmem:[#allocation3] ss:$8 sm:$0x0] %vm385, 0.0
      %s388 = scalar_lea.vmem [#allocation3], 129
      %389 = vst.msk [vmem:[%s388] ss:$8 sm:$0xf] %vm385, 0.0
      %390 = vst.msk [vmem:[%s388] ss:$8 sm:$0x0] %vm385, 0.0
      %v391 = vld [vmem:[%s369] sm:$0xff]
      %v392 = vld [vmem:[%s369 + $0x8] sm:$0xff]
      %393 = vst [vmem:[#allocation2 + $0x1] sm:$0xff] %v391
      %394 = vst [vmem:[#allocation2 + $0x9] sm:$0xff] %v392
      %v395 = vld [vmem:[#allocation2] sm:$0xff]
      %v396 = vld [vmem:[#allocation2 + $0x8] sm:$0xff]
      %v397 = vld [vmem:[%s2] sm:$0xff]
      %v398 = vld [vmem:[%s2 + $0x8] sm:$0xff]
      %v399 = vld [vmem:[%s2 + $0x10] sm:$0xff]
      %v400 = vld [vmem:[%s2 + $0x18] sm:$0xff]
      %v401 = vld [vmem:[%s2 + $0x20] sm:$0xff]
      %v402 = vld [vmem:[%s2 + $0x28] sm:$0xff]
      %v403 = vld [vmem:[%s2 + $0x30] sm:$0xff]
      %v404 = vld [vmem:[%s2 + $0x38] sm:$0xff]
      %v405 = vld [vmem:[%s2 + $0x40] sm:$0xff]
      %v406 = vld [vmem:[%s2 + $0x48] sm:$0xff]
      %v407 = vld [vmem:[%s2 + $0x50] sm:$0xff]
      %v408 = vld [vmem:[%s2 + $0x58] sm:$0xff]
      %v409 = vld [vmem:[%s2 + $0x60] sm:$0xff]
      %v410 = vld [vmem:[%s2 + $0x68] sm:$0xff]
      %v411 = vld [vmem:[%s2 + $0x70] sm:$0xff]
      %v412 = vld [vmem:[%s2 + $0x78] sm:$0xff]
      %v413 = vld [vmem:[#allocation2 + $0x1] sm:$0xff]
      %v414 = vld [vmem:[#allocation2 + $0x9] sm:$0xff]
      %s415 = scalar_lea.vmem %s2, 128
      %v416 = vld [vmem:[%s415] sm:$0xff]
      %v417 = vld [vmem:[%s415 + $0x8] sm:$0xff]
      %v418 = vld [vmem:[%s415 + $0x10] sm:$0xff]
      %v419 = vld [vmem:[%s415 + $0x18] sm:$0xff]
      %v420 = vld [vmem:[%s415 + $0x20] sm:$0xff]
      %v421 = vld [vmem:[%s415 + $0x28] sm:$0xff]
      %v422 = vld [vmem:[%s415 + $0x30] sm:$0xff]
      %v423 = vld [vmem:[%s415 + $0x38] sm:$0xff]
      %v424 = vld [vmem:[%s415 + $0x40] sm:$0xff]
      %v425 = vld [vmem:[%s415 + $0x48] sm:$0xff]
      %v426 = vld [vmem:[%s415 + $0x50] sm:$0xff]
      %v427 = vld [vmem:[%s415 + $0x58] sm:$0xff]
      %v428 = vld [vmem:[%s415 + $0x60] sm:$0xff]
      %v429 = vld [vmem:[%s415 + $0x68] sm:$0xff]
      %v430 = vld [vmem:[%s415 + $0x70] sm:$0xff]
      %v431 = vld [vmem:[%s415 + $0x78] sm:$0xff]
      %432 = vmatpush.msra.mxu0 %v431
      %433 = vmatpush.msra.mxu0 %v430
      %434 = vmatpush.msra.mxu0 %v429
      %435 = vmatpush.msra.mxu0 %v428
      %436 = vmatpush.msra.mxu0 %v427
      %437 = vmatpush.msra.mxu0 %v426
      %438 = vmatpush.msra.mxu0 %v425
      %439 = vmatpush.msra.mxu0 %v424
      %440 = vmatpush.msra.mxu0 %v423
      %441 = vmatpush.msra.mxu0 %v422
      %442 = vmatpush.msra.mxu0 %v421
      %443 = vmatpush.msra.mxu0 %v420
      %444 = vmatpush.msra.mxu0 %v419
      %445 = vmatpush.msra.mxu0 %v418
      %446 = vmatpush.msra.mxu0 %v417
      %447 = vmatpush.msra.mxu0 %v416
      %448 = vmatmul.f32.gmra.mxu0 %v413
      %v449 = vpop.f32.mrf.mxu0
      %v450 = vadd.f32 0.0, %v449
      %451 = vmatmul.f32.gmra.mxu0 %v414
      %v452 = vpop.f32.mrf.mxu0
      %v453 = vadd.f32 0.0, %v452
      %454 = vdwg.mxu0
      %455 = vmatpush.msra.mxu0 %v412
      %456 = vmatpush.msra.mxu0 %v411
      %457 = vmatpush.msra.mxu0 %v410
      %458 = vmatpush.msra.mxu0 %v409
      %459 = vmatpush.msra.mxu0 %v408
      %460 = vmatpush.msra.mxu0 %v407
      %461 = vmatpush.msra.mxu0 %v406
      %462 = vmatpush.msra.mxu0 %v405
      %463 = vmatpush.msra.mxu0 %v404
      %464 = vmatpush.msra.mxu0 %v403
      %465 = vmatpush.msra.mxu0 %v402
      %466 = vmatpush.msra.mxu0 %v401
      %467 = vmatpush.msra.mxu0 %v400
      %468 = vmatpush.msra.mxu0 %v399
      %469 = vmatpush.msra.mxu0 %v398
      %470 = vmatpush.msra.mxu0 %v397
      %471 = vmatmul.f32.gmra.mxu0 %v395
      %v472 = vpop.f32.mrf.mxu0
      %v473 = vadd.f32 %v450, %v472
      %474 = vmatmul.f32.gmra.mxu0 %v396
      %v475 = vpop.f32.mrf.mxu0
      %v476 = vadd.f32 %v453, %v475
      %477 = vdwg.mxu0
      %v478 = vld [vmem:[#allocation2 + $0x2] sm:$0xff]
      %v479 = vld [vmem:[#allocation2 + $0xa] sm:$0xff]
      %s480 = scalar_lea.vmem %s2, 256
      %v481 = vld [vmem:[%s480] sm:$0xff]
      %v482 = vld [vmem:[%s480 + $0x8] sm:$0xff]
      %v483 = vld [vmem:[%s480 + $0x10] sm:$0xff]
      %v484 = vld [vmem:[%s480 + $0x18] sm:$0xff]
      %v485 = vld [vmem:[%s480 + $0x20] sm:$0xff]
      %v486 = vld [vmem:[%s480 + $0x28] sm:$0xff]
      %v487 = vld [vmem:[%s480 + $0x30] sm:$0xff]
      %v488 = vld [vmem:[%s480 + $0x38] sm:$0xff]
      %v489 = vld [vmem:[%s480 + $0x40] sm:$0xff]
      %v490 = vld [vmem:[%s480 + $0x48] sm:$0xff]
      %v491 = vld [vmem:[%s480 + $0x50] sm:$0xff]
      %v492 = vld [vmem:[%s480 + $0x58] sm:$0xff]
      %v493 = vld [vmem:[%s480 + $0x60] sm:$0xff]
      %v494 = vld [vmem:[%s480 + $0x68] sm:$0xff]
      %v495 = vld [vmem:[%s480 + $0x70] sm:$0xff]
      %v496 = vld [vmem:[%s480 + $0x78] sm:$0xff]
      %497 = vmatpush.msra.mxu0 %v496
      %498 = vmatpush.msra.mxu0 %v495
      %499 = vmatpush.msra.mxu0 %v494
      %500 = vmatpush.msra.mxu0 %v493
      %501 = vmatpush.msra.mxu0 %v492
      %502 = vmatpush.msra.mxu0 %v491
      %503 = vmatpush.msra.mxu0 %v490
      %504 = vmatpush.msra.mxu0 %v489
      %505 = vmatpush.msra.mxu0 %v488
      %506 = vmatpush.msra.mxu0 %v487
      %507 = vmatpush.msra.mxu0 %v486
      %508 = vmatpush.msra.mxu0 %v485
      %509 = vmatpush.msra.mxu0 %v484
      %510 = vmatpush.msra.mxu0 %v483
      %511 = vmatpush.msra.mxu0 %v482
      %512 = vmatpush.msra.mxu0 %v481
      %513 = vmatmul.f32.gmra.mxu0 %v478
      %v514 = vpop.f32.mrf.mxu0
      %v515 = vadd.f32 0.0, %v514
      %516 = vmatmul.f32.gmra.mxu0 %v479
      %v517 = vpop.f32.mrf.mxu0
      %v518 = vadd.f32 0.0, %v517
      %519 = vdwg.mxu0
      %v520 = vadd.f32 %v473, %v515
      %v521 = vadd.f32 %v476, %v518
      %v522 = vld [vmem:[%s3] sm:$0x1]
      %v524 = vperm.slane %v522, 0
      %v526 = vadd.f32 %v520, %v524
      %v527 = vadd.f32 %v521, %v524
      %v528 = vmax.f32 %v526, 0.0
      %v529 = vmax.f32 %v527, 0.0
      %v530 = vld [vmem:[%s6] sm:$0xff]
      %v531 = vld [vmem:[%s6 + $0x8] sm:$0xff]
      %v532 = vld [vmem:[%s6 + $0x10] sm:$0xff]
      %v533 = vld [vmem:[%s6 + $0x18] sm:$0xff]
      %v534 = vld [vmem:[%s7] sm:$0xff]
      %v535 = vld [vmem:[%s7 + $0x8] sm:$0xff]
      %v536 = vld [vmem:[%s7 + $0x10] sm:$0xff]
      %v537 = vld [vmem:[%s7 + $0x18] sm:$0xff]
      %v538 = vld [vmem:[%s7 + $0x20] sm:$0xff]
      %v539 = vld [vmem:[%s7 + $0x28] sm:$0xff]
      %v540 = vld [vmem:[%s7 + $0x30] sm:$0xff]
      %v541 = vld [vmem:[%s7 + $0x38] sm:$0xff]
      %v542 = vld [vmem:[%s7 + $0x40] sm:$0xff]
      %v543 = vld [vmem:[%s7 + $0x48] sm:$0xff]
      %v544 = vld [vmem:[%s7 + $0x50] sm:$0xff]
      %v545 = vld [vmem:[%s7 + $0x58] sm:$0xff]
      %v546 = vld [vmem:[%s7 + $0x60] sm:$0xff]
      %v547 = vld [vmem:[%s7 + $0x68] sm:$0xff]
      %v548 = vld [vmem:[%s7 + $0x70] sm:$0xff]
      %v549 = vld [vmem:[%s7 + $0x78] sm:$0xff]
      %v550 = vld [vmem:[%s7 + $0x80] sm:$0xff]
      %v551 = vld [vmem:[%s7 + $0x88] sm:$0xff]
      %v552 = vld [vmem:[%s7 + $0x90] sm:$0xff]
      %v553 = vld [vmem:[%s7 + $0x98] sm:$0xff]
      %v554 = vld [vmem:[%s7 + $0xa0] sm:$0xff]
      %v555 = vld [vmem:[%s7 + $0xa8] sm:$0xff]
      %v556 = vld [vmem:[%s7 + $0xb0] sm:$0xff]
      %v557 = vld [vmem:[%s7 + $0xb8] sm:$0xff]
      %v558 = vld [vmem:[%s7 + $0xc0] sm:$0xff]
      %v559 = vld [vmem:[%s7 + $0xc8] sm:$0xff]
      %v560 = vld [vmem:[%s7 + $0xd0] sm:$0xff]
      %v561 = vld [vmem:[%s7 + $0xd8] sm:$0xff]
      %v562 = vld [vmem:[%s7 + $0xe0] sm:$0xff]
      %v563 = vld [vmem:[%s7 + $0xe8] sm:$0xff]
      %v564 = vld [vmem:[%s7 + $0xf0] sm:$0xff]
      %v565 = vld [vmem:[%s7 + $0xf8] sm:$0xff]
      %566 = vmatpush.msra.mxu0 %v564
      %567 = vmatpush.msra.mxu0 %v562
      %568 = vmatpush.msra.mxu0 %v560
      %569 = vmatpush.msra.mxu0 %v558
      %570 = vmatpush.msra.mxu0 %v556
      %571 = vmatpush.msra.mxu0 %v554
      %572 = vmatpush.msra.mxu0 %v552
      %573 = vmatpush.msra.mxu0 %v550
      %574 = vmatpush.msra.mxu0 %v548
      %575 = vmatpush.msra.mxu0 %v546
      %576 = vmatpush.msra.mxu0 %v544
      %577 = vmatpush.msra.mxu0 %v542
      %578 = vmatpush.msra.mxu0 %v540
      %579 = vmatpush.msra.mxu0 %v538
      %580 = vmatpush.msra.mxu0 %v536
      %581 = vmatpush.msra.mxu0 %v534
      %582 = vmatmul.f32.gmra.mxu0 %v528
      %v583 = vpop.f32.mrf.mxu0
      %v584 = vadd.f32 0.0, %v583
      %585 = vmatmul.f32.gmra.mxu0 %v529
      %v586 = vpop.f32.mrf.mxu0
      %v587 = vadd.f32 0.0, %v586
      %588 = vdwg.mxu0
      %589 = vmatpush.msra.mxu0 %v565
      %590 = vmatpush.msra.mxu0 %v563
      %591 = vmatpush.msra.mxu0 %v561
      %592 = vmatpush.msra.mxu0 %v559
      %593 = vmatpush.msra.mxu0 %v557
      %594 = vmatpush.msra.mxu0 %v555
      %595 = vmatpush.msra.mxu0 %v553
      %596 = vmatpush.msra.mxu0 %v551
      %597 = vmatpush.msra.mxu0 %v549
      %598 = vmatpush.msra.mxu0 %v547
      %599 = vmatpush.msra.mxu0 %v545
      %600 = vmatpush.msra.mxu0 %v543
      %601 = vmatpush.msra.mxu0 %v541
      %602 = vmatpush.msra.mxu0 %v539
      %603 = vmatpush.msra.mxu0 %v537
      %604 = vmatpush.msra.mxu0 %v535
      %605 = vmatmul.f32.gmra.mxu0 %v528
      %v606 = vpop.f32.mrf.mxu0
      %v607 = vadd.f32 0.0, %v606
      %608 = vmatmul.f32.gmra.mxu0 %v529
      %v609 = vpop.f32.mrf.mxu0
      %v610 = vadd.f32 0.0, %v609
      %611 = vdwg.mxu0
      %vm612 = vcmask 130048
      %v614 = vsel %vm612, %v530, 0
      %v617 = vsel %vm612, %v531, 0
      %v620 = vsel %vm612, %v532, 0
      %v623 = vsel %vm612, %v533, 0
      %625 = vmatpush.msra.mxu0 0.0
      %626 = vmatpush.msra.mxu0 0.0
      %627 = vmatpush.msra.mxu0 0.0
      %628 = vmatpush.msra.mxu0 0.0
      %629 = vmatpush.msra.mxu0 0.0
      %630 = vmatpush.msra.mxu0 0.0
      %631 = vmatpush.msra.mxu0 0.0
      %632 = vmatpush.msra.mxu0 0.0
      %633 = vmatpush.msra.mxu0 0.0
      %634 = vmatpush.msra.mxu0 0.0
      %635 = vmatpush.msra.mxu0 0.0
      %636 = vmatpush.msra.mxu0 0.0
      %637 = vmatpush.msra.mxu0 0.0
      %638 = vmatpush.msra.mxu0 0.0
      %639 = vmatpush.msra.mxu0 %v587
      %640 = vmatpush.msra.mxu0 %v584
      %641 = vmatmul.f32.gmra.mxu0 %v614
      %v642 = vpop.f32.mrf.mxu0
      %v643 = vadd.f32 0.0, %v642
      %644 = vmatmul.f32.gmra.mxu0 %v617
      %v645 = vpop.f32.mrf.mxu0
      %v646 = vadd.f32 0.0, %v645
      %647 = vmatmul.f32.gmra.mxu0 %v620
      %v648 = vpop.f32.mrf.mxu0
      %v649 = vadd.f32 0.0, %v648
      %650 = vmatmul.f32.gmra.mxu0 %v623
      %v651 = vpop.f32.mrf.mxu0
      %v652 = vadd.f32 0.0, %v651
      %653 = vdwg.mxu0
      %654 = vmatpush.msra.mxu0 0.0
      %655 = vmatpush.msra.mxu0 0.0
      %656 = vmatpush.msra.mxu0 0.0
      %657 = vmatpush.msra.mxu0 0.0
      %658 = vmatpush.msra.mxu0 0.0
      %659 = vmatpush.msra.mxu0 0.0
      %660 = vmatpush.msra.mxu0 0.0
      %661 = vmatpush.msra.mxu0 0.0
      %662 = vmatpush.msra.mxu0 0.0
      %663 = vmatpush.msra.mxu0 0.0
      %664 = vmatpush.msra.mxu0 0.0
      %665 = vmatpush.msra.mxu0 0.0
      %666 = vmatpush.msra.mxu0 0.0
      %667 = vmatpush.msra.mxu0 0.0
      %668 = vmatpush.msra.mxu0 %v610
      %669 = vmatpush.msra.mxu0 %v607
      %670 = vmatmul.f32.gmra.mxu0 %v614
      %v671 = vpop.f32.mrf.mxu0
      %v672 = vadd.f32 0.0, %v671
      %673 = vmatmul.f32.gmra.mxu0 %v617
      %v674 = vpop.f32.mrf.mxu0
      %v675 = vadd.f32 0.0, %v674
      %676 = vmatmul.f32.gmra.mxu0 %v620
      %v677 = vpop.f32.mrf.mxu0
      %v678 = vadd.f32 0.0, %v677
      %679 = vmatmul.f32.gmra.mxu0 %v623
      %v680 = vpop.f32.mrf.mxu0
      %v681 = vadd.f32 0.0, %v680
      %682 = vdwg.mxu0
      %v683 = vld [vmem:[%s8] sm:$0xff]
      %v684 = vld [vmem:[%s8 + $0x8] sm:$0xff]
      %v685 = vld [vmem:[%s8 + $0x10] sm:$0xff]
      %v686 = vld [vmem:[%s8 + $0x18] sm:$0xff]
      %v687 = vld [vmem:[%s374] sm:$0xff]
      %v688 = vld [vmem:[%s374 + $0x8] sm:$0xf]
      %v689 = vld [vmem:[%s9] sm:$0xff]
      %v690 = vld [vmem:[%s9 + $0x8] sm:$0xff]
      %v691 = vld [vmem:[%s9 + $0x10] sm:$0xff]
      %v692 = vld [vmem:[%s9 + $0x18] sm:$0xff]
      %v693 = vld [vmem:[%s9 + $0x20] sm:$0xff]
      %v694 = vld [vmem:[%s9 + $0x28] sm:$0xff]
      %v695 = vld [vmem:[%s9 + $0x30] sm:$0xff]
      %v696 = vld [vmem:[%s9 + $0x38] sm:$0xff]
      %v697 = vld [vmem:[%s9 + $0x40] sm:$0xff]
      %v698 = vld [vmem:[%s9 + $0x48] sm:$0xff]
      %v699 = vld [vmem:[%s9 + $0x50] sm:$0xff]
      %v700 = vld [vmem:[%s9 + $0x58] sm:$0xff]
      %v701 = vld [vmem:[%s9 + $0x60] sm:$0xff]
      %v702 = vld [vmem:[%s9 + $0x68] sm:$0xff]
      %v703 = vld [vmem:[%s9 + $0x70] sm:$0xff]
      %v704 = vld [vmem:[%s9 + $0x78] sm:$0xff]
      %v705 = vld [vmem:[%s9 + $0x80] sm:$0xff]
      %v706 = vld [vmem:[%s9 + $0x88] sm:$0xff]
      %v707 = vld [vmem:[%s9 + $0x90] sm:$0xff]
      %v708 = vld [vmem:[%s9 + $0x98] sm:$0xff]
      %v709 = vld [vmem:[%s9 + $0xa0] sm:$0xff]
      %v710 = vld [vmem:[%s9 + $0xa8] sm:$0xff]
      %v711 = vld [vmem:[%s9 + $0xb0] sm:$0xff]
      %v712 = vld [vmem:[%s9 + $0xb8] sm:$0xff]
      %v713 = vld [vmem:[%s9 + $0xc0] sm:$0xff]
      %v714 = vld [vmem:[%s9 + $0xc8] sm:$0xff]
      %v715 = vld [vmem:[%s9 + $0xd0] sm:$0xff]
      %v716 = vld [vmem:[%s9 + $0xd8] sm:$0xff]
      %v717 = vld [vmem:[%s9 + $0xe0] sm:$0xff]
      %v718 = vld [vmem:[%s9 + $0xe8] sm:$0xff]
      %v719 = vld [vmem:[%s9 + $0xf0] sm:$0xff]
      %v720 = vld [vmem:[%s9 + $0xf8] sm:$0xff]
      %721 = vmatpush.msra.mxu0 %v719
      %722 = vmatpush.msra.mxu0 %v717
      %723 = vmatpush.msra.mxu0 %v715
      %724 = vmatpush.msra.mxu0 %v713
      %725 = vmatpush.msra.mxu0 %v711
      %726 = vmatpush.msra.mxu0 %v709
      %727 = vmatpush.msra.mxu0 %v707
      %728 = vmatpush.msra.mxu0 %v705
      %729 = vmatpush.msra.mxu0 %v703
      %730 = vmatpush.msra.mxu0 %v701
      %731 = vmatpush.msra.mxu0 %v699
      %732 = vmatpush.msra.mxu0 %v697
      %733 = vmatpush.msra.mxu0 %v695
      %734 = vmatpush.msra.mxu0 %v693
      %735 = vmatpush.msra.mxu0 %v691
      %736 = vmatpush.msra.mxu0 %v689
      %737 = vmatmul.f32.gmra.mxu0 %v687
      %v738 = vpop.f32.mrf.mxu0
      %v739 = vadd.f32 0.0, %v738
      %740 = vmatmul.f32.gmra.mxu0 %v688
      %v741 = vpop.f32.mrf.mxu0
      %v742 = vadd.f32 0.0, %v741
      %743 = vdwg.mxu0
      %744 = vmatpush.msra.mxu0 %v720
      %745 = vmatpush.msra.mxu0 %v718
      %746 = vmatpush.msra.mxu0 %v716
      %747 = vmatpush.msra.mxu0 %v714
      %748 = vmatpush.msra.mxu0 %v712
      %749 = vmatpush.msra.mxu0 %v710
      %750 = vmatpush.msra.mxu0 %v708
      %751 = vmatpush.msra.mxu0 %v706
      %752 = vmatpush.msra.mxu0 %v704
      %753 = vmatpush.msra.mxu0 %v702
      %754 = vmatpush.msra.mxu0 %v700
      %755 = vmatpush.msra.mxu0 %v698
      %756 = vmatpush.msra.mxu0 %v696
      %757 = vmatpush.msra.mxu0 %v694
      %758 = vmatpush.msra.mxu0 %v692
      %759 = vmatpush.msra.mxu0 %v690
      %760 = vmatmul.f32.gmra.mxu0 %v687
      %v761 = vpop.f32.mrf.mxu0
      %v762 = vadd.f32 0.0, %v761
      %763 = vmatmul.f32.gmra.mxu0 %v688
      %v764 = vpop.f32.mrf.mxu0
      %v765 = vadd.f32 0.0, %v764
      %766 = vdwg.mxu0
      %vm767 = vcmask 97280
      %v769 = vsel %vm767, %v683, 0
      %v772 = vsel %vm767, %v684, 0
      %v775 = vsel %vm767, %v685, 0
      %v778 = vsel %vm767, %v686, 0
      %vm780 = vcmask 1043456
      %v782 = vsel %vm780, %v742, 0
      %v785 = vsel %vm780, %v765, 0
      %787 = vmatpush.msra.mxu0 0.0
      %788 = vmatpush.msra.mxu0 0.0
      %789 = vmatpush.msra.mxu0 0.0
      %790 = vmatpush.msra.mxu0 0.0
      %791 = vmatpush.msra.mxu0 0.0
      %792 = vmatpush.msra.mxu0 0.0
      %793 = vmatpush.msra.mxu0 0.0
      %794 = vmatpush.msra.mxu0 0.0
      %795 = vmatpush.msra.mxu0 0.0
      %796 = vmatpush.msra.mxu0 0.0
      %797 = vmatpush.msra.mxu0 0.0
      %798 = vmatpush.msra.mxu0 0.0
      %799 = vmatpush.msra.mxu0 0.0
      %800 = vmatpush.msra.mxu0 0.0
      %801 = vmatpush.msra.mxu0 %v782
      %802 = vmatpush.msra.mxu0 %v739
      %803 = vmatmul.f32.gmra.mxu0 %v769
      %v804 = vpop.f32.mrf.mxu0
      %v805 = vadd.f32 0.0, %v804
      %806 = vmatmul.f32.gmra.mxu0 %v772
      %v807 = vpop.f32.mrf.mxu0
      %v808 = vadd.f32 0.0, %v807
      %809 = vmatmul.f32.gmra.mxu0 %v775
      %v810 = vpop.f32.mrf.mxu0
      %v811 = vadd.f32 0.0, %v810
      %812 = vmatmul.f32.gmra.mxu0 %v778
      %v813 = vpop.f32.mrf.mxu0
      %v814 = vadd.f32 0.0, %v813
      %815 = vdwg.mxu0
      %816 = vmatpush.msra.mxu0 0.0
      %817 = vmatpush.msra.mxu0 0.0
      %818 = vmatpush.msra.mxu0 0.0
      %819 = vmatpush.msra.mxu0 0.0
      %820 = vmatpush.msra.mxu0 0.0
      %821 = vmatpush.msra.mxu0 0.0
      %822 = vmatpush.msra.mxu0 0.0
      %823 = vmatpush.msra.mxu0 0.0
      %824 = vmatpush.msra.mxu0 0.0
      %825 = vmatpush.msra.mxu0 0.0
      %826 = vmatpush.msra.mxu0 0.0
      %827 = vmatpush.msra.mxu0 0.0
      %828 = vmatpush.msra.mxu0 0.0
      %829 = vmatpush.msra.mxu0 0.0
      %830 = vmatpush.msra.mxu0 %v785
      %831 = vmatpush.msra.mxu0 %v762
      %832 = vmatmul.f32.gmra.mxu0 %v769
      %v833 = vpop.f32.mrf.mxu0
      %v834 = vadd.f32 0.0, %v833
      %835 = vmatmul.f32.gmra.mxu0 %v772
      %v836 = vpop.f32.mrf.mxu0
      %v837 = vadd.f32 0.0, %v836
      %838 = vmatmul.f32.gmra.mxu0 %v775
      %v839 = vpop.f32.mrf.mxu0
      %v840 = vadd.f32 0.0, %v839
      %841 = vmatmul.f32.gmra.mxu0 %v778
      %v842 = vpop.f32.mrf.mxu0
      %v843 = vadd.f32 0.0, %v842
      %844 = vdwg.mxu0
      %vm853 = vcmask 1040384
      %v854 = vrot.slane %v805, 7
      %v855 = vrot.slane %v834, 7
      %v856 = vrot.slane %v808, 7
      %v857 = vsel %vm853, %v854, %v856
      %v858 = vrot.slane %v837, 7
      %v859 = vsel %vm853, %v855, %v858
      %v860 = vrot.slane %v811, 7
      %v861 = vsel %vm853, %v856, %v860
      %v862 = vrot.slane %v840, 7
      %v863 = vsel %vm853, %v858, %v862
      %v864 = vrot.slane %v814, 7
      %v865 = vsel %vm853, %v860, %v864
      %v866 = vrot.slane %v843, 7
      %v867 = vsel %vm853, %v862, %v866
      %878 = vst [vmem:[#allocation3] sm:$0xfe] %v854
      %879 = vst [vmem:[#allocation3 + $0x8] sm:$0xfe] %v855
      %880 = vst [vmem:[#allocation3 + $0x20] sm:$0xff] %v857
      %881 = vst [vmem:[#allocation3 + $0x28] sm:$0xff] %v859
      %882 = vst [vmem:[#allocation3 + $0x40] sm:$0xff] %v861
      %883 = vst [vmem:[#allocation3 + $0x48] sm:$0xff] %v863
      %884 = vst [vmem:[#allocation3 + $0x60] sm:$0xff] %v865
      %885 = vst [vmem:[#allocation3 + $0x68] sm:$0xff] %v867
      %886 = vst [vmem:[#allocation3 + $0x80] sm:$0x1] %v864
      %887 = vst [vmem:[#allocation3 + $0x88] sm:$0x1] %v866
      %v896 = vrot.slane %v643, 7
      %v897 = vrot.slane %v672, 7
      %v898 = vrot.slane %v646, 7
      %v899 = vsel %vm853, %v896, %v898
      %v900 = vrot.slane %v675, 7
      %v901 = vsel %vm853, %v897, %v900
      %v902 = vrot.slane %v649, 7
      %v903 = vsel %vm853, %v898, %v902
      %v904 = vrot.slane %v678, 7
      %v905 = vsel %vm853, %v900, %v904
      %v906 = vrot.slane %v652, 7
      %v907 = vsel %vm853, %v902, %v906
      %v908 = vrot.slane %v681, 7
      %v909 = vsel %vm853, %v904, %v908
      %920 = vst [vmem:[#allocation3 + $0x10] sm:$0xfe] %v896
      %921 = vst [vmem:[#allocation3 + $0x18] sm:$0xfe] %v897
      %922 = vst [vmem:[#allocation3 + $0x30] sm:$0xff] %v899
      %923 = vst [vmem:[#allocation3 + $0x38] sm:$0xff] %v901
      %924 = vst [vmem:[#allocation3 + $0x50] sm:$0xff] %v903
      %925 = vst [vmem:[#allocation3 + $0x58] sm:$0xff] %v905
      %926 = vst [vmem:[#allocation3 + $0x70] sm:$0xff] %v907
      %927 = vst [vmem:[#allocation3 + $0x78] sm:$0xff] %v909
      %928 = vst [vmem:[#allocation3 + $0x90] sm:$0x1] %v906
      %929 = vst [vmem:[#allocation3 + $0x98] sm:$0x1] %v908
      %v930 = vld [vmem:[#allocation3] sm:$0xff]
      %v931 = vld [vmem:[#allocation3 + $0x8] sm:$0xff]
      %v932 = vld [vmem:[#allocation3 + $0x10] sm:$0xff]
      %v933 = vld [vmem:[#allocation3 + $0x18] sm:$0xff]
      %v934 = vld [vmem:[#allocation3 + $0x20] sm:$0xff]
      %v935 = vld [vmem:[#allocation3 + $0x28] sm:$0xff]
      %v936 = vld [vmem:[#allocation3 + $0x30] sm:$0xff]
      %v937 = vld [vmem:[#allocation3 + $0x38] sm:$0xff]
      %v938 = vld [vmem:[#allocation3 + $0x40] sm:$0xff]
      %v939 = vld [vmem:[#allocation3 + $0x48] sm:$0xff]
      %v940 = vld [vmem:[#allocation3 + $0x50] sm:$0xff]
      %v941 = vld [vmem:[#allocation3 + $0x58] sm:$0xff]
      %v942 = vld [vmem:[#allocation3 + $0x60] sm:$0xff]
      %v943 = vld [vmem:[#allocation3 + $0x68] sm:$0xff]
      %v944 = vld [vmem:[#allocation3 + $0x70] sm:$0xff]
      %v945 = vld [vmem:[#allocation3 + $0x78] sm:$0xff]
      %v946 = vld [vmem:[%s4] sm:$0xff]
      %v947 = vld [vmem:[%s4 + $0x8] sm:$0xff]
      %v948 = vld [vmem:[%s4 + $0x10] sm:$0xff]
      %v949 = vld [vmem:[%s4 + $0x18] sm:$0xff]
      %v950 = vld [vmem:[%s4 + $0x20] sm:$0xff]
      %v951 = vld [vmem:[%s4 + $0x28] sm:$0xff]
      %v952 = vld [vmem:[%s4 + $0x30] sm:$0xff]
      %v953 = vld [vmem:[%s4 + $0x38] sm:$0xff]
      %v954 = vld [vmem:[%s4 + $0x40] sm:$0xff]
      %v955 = vld [vmem:[%s4 + $0x48] sm:$0xff]
      %v956 = vld [vmem:[%s4 + $0x50] sm:$0xff]
      %v957 = vld [vmem:[%s4 + $0x58] sm:$0xff]
      %v958 = vld [vmem:[%s4 + $0x60] sm:$0xff]
      %v959 = vld [vmem:[%s4 + $0x68] sm:$0xff]
      %v960 = vld [vmem:[%s4 + $0x70] sm:$0xff]
      %v961 = vld [vmem:[%s4 + $0x78] sm:$0xff]
      %v962 = vld [vmem:[%s4 + $0x80] sm:$0xff]
      %v963 = vld [vmem:[%s4 + $0x88] sm:$0xff]
      %v964 = vld [vmem:[%s4 + $0x90] sm:$0xff]
      %v965 = vld [vmem:[%s4 + $0x98] sm:$0xff]
      %v966 = vld [vmem:[%s4 + $0xa0] sm:$0xff]
      %v967 = vld [vmem:[%s4 + $0xa8] sm:$0xff]
      %v968 = vld [vmem:[%s4 + $0xb0] sm:$0xff]
      %v969 = vld [vmem:[%s4 + $0xb8] sm:$0xff]
      %v970 = vld [vmem:[%s4 + $0xc0] sm:$0xff]
      %v971 = vld [vmem:[%s4 + $0xc8] sm:$0xff]
      %v972 = vld [vmem:[%s4 + $0xd0] sm:$0xff]
      %v973 = vld [vmem:[%s4 + $0xd8] sm:$0xff]
      %v974 = vld [vmem:[%s4 + $0xe0] sm:$0xff]
      %v975 = vld [vmem:[%s4 + $0xe8] sm:$0xff]
      %v976 = vld [vmem:[%s4 + $0xf0] sm:$0xff]
      %v977 = vld [vmem:[%s4 + $0xf8] sm:$0xff]
      %v978 = vld [vmem:[%s4 + $0x100] sm:$0xff]
      %v979 = vld [vmem:[%s4 + $0x108] sm:$0xff]
      %v980 = vld [vmem:[%s4 + $0x110] sm:$0xff]
      %v981 = vld [vmem:[%s4 + $0x118] sm:$0xff]
      %v982 = vld [vmem:[%s4 + $0x120] sm:$0xff]
      %v983 = vld [vmem:[%s4 + $0x128] sm:$0xff]
      %v984 = vld [vmem:[%s4 + $0x130] sm:$0xff]
      %v985 = vld [vmem:[%s4 + $0x138] sm:$0xff]
      %v986 = vld [vmem:[%s4 + $0x140] sm:$0xff]
      %v987 = vld [vmem:[%s4 + $0x148] sm:$0xff]
      %v988 = vld [vmem:[%s4 + $0x150] sm:$0xff]
      %v989 = vld [vmem:[%s4 + $0x158] sm:$0xff]
      %v990 = vld [vmem:[%s4 + $0x160] sm:$0xff]
      %v991 = vld [vmem:[%s4 + $0x168] sm:$0xff]
      %v992 = vld [vmem:[%s4 + $0x170] sm:$0xff]
      %v993 = vld [vmem:[%s4 + $0x178] sm:$0xff]
      %v994 = vld [vmem:[%s4 + $0x180] sm:$0xff]
      %v995 = vld [vmem:[%s4 + $0x188] sm:$0xff]
      %v996 = vld [vmem:[%s4 + $0x190] sm:$0xff]
      %v997 = vld [vmem:[%s4 + $0x198] sm:$0xff]
      %v998 = vld [vmem:[%s4 + $0x1a0] sm:$0xff]
      %v999 = vld [vmem:[%s4 + $0x1a8] sm:$0xff]
      %v1000 = vld [vmem:[%s4 + $0x1b0] sm:$0xff]
      %v1001 = vld [vmem:[%s4 + $0x1b8] sm:$0xff]
      %v1002 = vld [vmem:[%s4 + $0x1c0] sm:$0xff]
      %v1003 = vld [vmem:[%s4 + $0x1c8] sm:$0xff]
      %v1004 = vld [vmem:[%s4 + $0x1d0] sm:$0xff]
      %v1005 = vld [vmem:[%s4 + $0x1d8] sm:$0xff]
      %v1006 = vld [vmem:[%s4 + $0x1e0] sm:$0xff]
      %v1007 = vld [vmem:[%s4 + $0x1e8] sm:$0xff]
      %v1008 = vld [vmem:[%s4 + $0x1f0] sm:$0xff]
      %v1009 = vld [vmem:[%s4 + $0x1f8] sm:$0xff]
      %v1010 = vld [vmem:[%s4 + $0x200] sm:$0xff]
      %v1011 = vld [vmem:[%s4 + $0x208] sm:$0xff]
      %v1012 = vld [vmem:[%s4 + $0x210] sm:$0xff]
      %v1013 = vld [vmem:[%s4 + $0x218] sm:$0xff]
      %v1014 = vld [vmem:[%s4 + $0x220] sm:$0xff]
      %v1015 = vld [vmem:[%s4 + $0x228] sm:$0xff]
      %v1016 = vld [vmem:[%s4 + $0x230] sm:$0xff]
      %v1017 = vld [vmem:[%s4 + $0x238] sm:$0xff]
      %v1018 = vld [vmem:[%s4 + $0x240] sm:$0xff]
      %v1019 = vld [vmem:[%s4 + $0x248] sm:$0xff]
      %v1020 = vld [vmem:[%s4 + $0x250] sm:$0xff]
      %v1021 = vld [vmem:[%s4 + $0x258] sm:$0xff]
      %v1022 = vld [vmem:[%s4 + $0x260] sm:$0xff]
      %v1023 = vld [vmem:[%s4 + $0x268] sm:$0xff]
      %v1024 = vld [vmem:[%s4 + $0x270] sm:$0xff]
      %v1025 = vld [vmem:[%s4 + $0x278] sm:$0xff]
      %v1026 = vld [vmem:[%s4 + $0x280] sm:$0xff]
      %v1027 = vld [vmem:[%s4 + $0x288] sm:$0xff]
      %v1028 = vld [vmem:[%s4 + $0x290] sm:$0xff]
      %v1029 = vld [vmem:[%s4 + $0x298] sm:$0xff]
      %v1030 = vld [vmem:[%s4 + $0x2a0] sm:$0xff]
      %v1031 = vld [vmem:[%s4 + $0x2a8] sm:$0xff]
      %v1032 = vld [vmem:[%s4 + $0x2b0] sm:$0xff]
      %v1033 = vld [vmem:[%s4 + $0x2b8] sm:$0xff]
      %v1034 = vld [vmem:[%s4 + $0x2c0] sm:$0xff]
      %v1035 = vld [vmem:[%s4 + $0x2c8] sm:$0xff]
      %v1036 = vld [vmem:[%s4 + $0x2d0] sm:$0xff]
      %v1037 = vld [vmem:[%s4 + $0x2d8] sm:$0xff]
      %v1038 = vld [vmem:[%s4 + $0x2e0] sm:$0xff]
      %v1039 = vld [vmem:[%s4 + $0x2e8] sm:$0xff]
      %v1040 = vld [vmem:[%s4 + $0x2f0] sm:$0xff]
      %v1041 = vld [vmem:[%s4 + $0x2f8] sm:$0xff]
      %v1042 = vld [vmem:[%s4 + $0x300] sm:$0xff]
      %v1043 = vld [vmem:[%s4 + $0x308] sm:$0xff]
      %v1044 = vld [vmem:[%s4 + $0x310] sm:$0xff]
      %v1045 = vld [vmem:[%s4 + $0x318] sm:$0xff]
      %v1046 = vld [vmem:[%s4 + $0x320] sm:$0xff]
      %v1047 = vld [vmem:[%s4 + $0x328] sm:$0xff]
      %v1048 = vld [vmem:[%s4 + $0x330] sm:$0xff]
      %v1049 = vld [vmem:[%s4 + $0x338] sm:$0xff]
      %v1050 = vld [vmem:[%s4 + $0x340] sm:$0xff]
      %v1051 = vld [vmem:[%s4 + $0x348] sm:$0xff]
      %v1052 = vld [vmem:[%s4 + $0x350] sm:$0xff]
      %v1053 = vld [vmem:[%s4 + $0x358] sm:$0xff]
      %v1054 = vld [vmem:[%s4 + $0x360] sm:$0xff]
      %v1055 = vld [vmem:[%s4 + $0x368] sm:$0xff]
      %v1056 = vld [vmem:[%s4 + $0x370] sm:$0xff]
      %v1057 = vld [vmem:[%s4 + $0x378] sm:$0xff]
      %v1058 = vld [vmem:[%s4 + $0x380] sm:$0xff]
      %v1059 = vld [vmem:[%s4 + $0x388] sm:$0xff]
      %v1060 = vld [vmem:[%s4 + $0x390] sm:$0xff]
      %v1061 = vld [vmem:[%s4 + $0x398] sm:$0xff]
      %v1062 = vld [vmem:[%s4 + $0x3a0] sm:$0xff]
      %v1063 = vld [vmem:[%s4 + $0x3a8] sm:$0xff]
      %v1064 = vld [vmem:[%s4 + $0x3b0] sm:$0xff]
      %v1065 = vld [vmem:[%s4 + $0x3b8] sm:$0xff]
      %v1066 = vld [vmem:[%s4 + $0x3c0] sm:$0xff]
      %v1067 = vld [vmem:[%s4 + $0x3c8] sm:$0xff]
      %v1068 = vld [vmem:[%s4 + $0x3d0] sm:$0xff]
      %v1069 = vld [vmem:[%s4 + $0x3d8] sm:$0xff]
      %v1070 = vld [vmem:[%s4 + $0x3e0] sm:$0xff]
      %v1071 = vld [vmem:[%s4 + $0x3e8] sm:$0xff]
      %v1072 = vld [vmem:[%s4 + $0x3f0] sm:$0xff]
      %v1073 = vld [vmem:[%s4 + $0x3f8] sm:$0xff]
      %v1074 = vld [vmem:[#allocation3] sm:$0xfe]
      %v1075 = vld [vmem:[#allocation3 + $0x8] sm:$0xfe]
      %v1076 = vld [vmem:[#allocation3 + $0x10] sm:$0xfe]
      %v1077 = vld [vmem:[#allocation3 + $0x18] sm:$0xfe]
      %v1078 = vld [vmem:[#allocation3 + $0x80] sm:$0x1]
      %v1079 = vld [vmem:[#allocation3 + $0x88] sm:$0x1]
      %v1080 = vld [vmem:[#allocation3 + $0x90] sm:$0x1]
      %v1081 = vld [vmem:[#allocation3 + $0x98] sm:$0x1]
      %s1082 = scalar_lea.vmem %s4, 1024
      %v1083 = vld [vmem:[%s1082] sm:$0xff]
      %v1084 = vld [vmem:[%s1082 + $0x8] sm:$0xff]
      %v1085 = vld [vmem:[%s1082 + $0x10] sm:$0xff]
      %v1086 = vld [vmem:[%s1082 + $0x18] sm:$0xff]
      %v1087 = vld [vmem:[%s1082 + $0x20] sm:$0xff]
      %v1088 = vld [vmem:[%s1082 + $0x28] sm:$0xff]
      %v1089 = vld [vmem:[%s1082 + $0x30] sm:$0xff]
      %v1090 = vld [vmem:[%s1082 + $0x38] sm:$0xff]
      %v1091 = vld [vmem:[%s1082 + $0x40] sm:$0xff]
      %v1092 = vld [vmem:[%s1082 + $0x48] sm:$0xff]
      %v1093 = vld [vmem:[%s1082 + $0x50] sm:$0xff]
      %v1094 = vld [vmem:[%s1082 + $0x58] sm:$0xff]
      %v1095 = vld [vmem:[%s1082 + $0x60] sm:$0xff]
      %v1096 = vld [vmem:[%s1082 + $0x68] sm:$0xff]
      %v1097 = vld [vmem:[%s1082 + $0x70] sm:$0xff]
      %v1098 = vld [vmem:[%s1082 + $0x78] sm:$0xff]
      %v1099 = vld [vmem:[%s1082 + $0x80] sm:$0xff]
      %v1100 = vld [vmem:[%s1082 + $0x88] sm:$0xff]
      %v1101 = vld [vmem:[%s1082 + $0x90] sm:$0xff]
      %v1102 = vld [vmem:[%s1082 + $0x98] sm:$0xff]
      %v1103 = vld [vmem:[%s1082 + $0xa0] sm:$0xff]
      %v1104 = vld [vmem:[%s1082 + $0xa8] sm:$0xff]
      %v1105 = vld [vmem:[%s1082 + $0xb0] sm:$0xff]
      %v1106 = vld [vmem:[%s1082 + $0xb8] sm:$0xff]
      %v1107 = vld [vmem:[%s1082 + $0xc0] sm:$0xff]
      %v1108 = vld [vmem:[%s1082 + $0xc8] sm:$0xff]
      %v1109 = vld [vmem:[%s1082 + $0xd0] sm:$0xff]
      %v1110 = vld [vmem:[%s1082 + $0xd8] sm:$0xff]
      %v1111 = vld [vmem:[%s1082 + $0xe0] sm:$0xff]
      %v1112 = vld [vmem:[%s1082 + $0xe8] sm:$0xff]
      %v1113 = vld [vmem:[%s1082 + $0xf0] sm:$0xff]
      %v1114 = vld [vmem:[%s1082 + $0xf8] sm:$0xff]
      %v1115 = vld [vmem:[%s1082 + $0x100] sm:$0xff]
      %v1116 = vld [vmem:[%s1082 + $0x108] sm:$0xff]
      %v1117 = vld [vmem:[%s1082 + $0x110] sm:$0xff]
      %v1118 = vld [vmem:[%s1082 + $0x118] sm:$0xff]
      %v1119 = vld [vmem:[%s1082 + $0x120] sm:$0xff]
      %v1120 = vld [vmem:[%s1082 + $0x128] sm:$0xff]
      %v1121 = vld [vmem:[%s1082 + $0x130] sm:$0xff]
      %v1122 = vld [vmem:[%s1082 + $0x138] sm:$0xff]
      %v1123 = vld [vmem:[%s1082 + $0x140] sm:$0xff]
      %v1124 = vld [vmem:[%s1082 + $0x148] sm:$0xff]
      %v1125 = vld [vmem:[%s1082 + $0x150] sm:$0xff]
      %v1126 = vld [vmem:[%s1082 + $0x158] sm:$0xff]
      %v1127 = vld [vmem:[%s1082 + $0x160] sm:$0xff]
      %v1128 = vld [vmem:[%s1082 + $0x168] sm:$0xff]
      %v1129 = vld [vmem:[%s1082 + $0x170] sm:$0xff]
      %v1130 = vld [vmem:[%s1082 + $0x178] sm:$0xff]
      %v1131 = vld [vmem:[%s1082 + $0x180] sm:$0xff]
      %v1132 = vld [vmem:[%s1082 + $0x188] sm:$0xff]
      %v1133 = vld [vmem:[%s1082 + $0x190] sm:$0xff]
      %v1134 = vld [vmem:[%s1082 + $0x198] sm:$0xff]
      %v1135 = vld [vmem:[%s1082 + $0x1a0] sm:$0xff]
      %v1136 = vld [vmem:[%s1082 + $0x1a8] sm:$0xff]
      %v1137 = vld [vmem:[%s1082 + $0x1b0] sm:$0xff]
      %v1138 = vld [vmem:[%s1082 + $0x1b8] sm:$0xff]
      %v1139 = vld [vmem:[%s1082 + $0x1c0] sm:$0xff]
      %v1140 = vld [vmem:[%s1082 + $0x1c8] sm:$0xff]
      %v1141 = vld [vmem:[%s1082 + $0x1d0] sm:$0xff]
      %v1142 = vld [vmem:[%s1082 + $0x1d8] sm:$0xff]
      %v1143 = vld [vmem:[%s1082 + $0x1e0] sm:$0xff]
      %v1144 = vld [vmem:[%s1082 + $0x1e8] sm:$0xff]
      %v1145 = vld [vmem:[%s1082 + $0x1f0] sm:$0xff]
      %v1146 = vld [vmem:[%s1082 + $0x1f8] sm:$0xff]
      %v1147 = vld [vmem:[%s1082 + $0x200] sm:$0xff]
      %v1148 = vld [vmem:[%s1082 + $0x208] sm:$0xff]
      %v1149 = vld [vmem:[%s1082 + $0x210] sm:$0xff]
      %v1150 = vld [vmem:[%s1082 + $0x218] sm:$0xff]
      %v1151 = vld [vmem:[%s1082 + $0x220] sm:$0xff]
      %v1152 = vld [vmem:[%s1082 + $0x228] sm:$0xff]
      %v1153 = vld [vmem:[%s1082 + $0x230] sm:$0xff]
      %v1154 = vld [vmem:[%s1082 + $0x238] sm:$0xff]
      %v1155 = vld [vmem:[%s1082 + $0x240] sm:$0xff]
      %v1156 = vld [vmem:[%s1082 + $0x248] sm:$0xff]
      %v1157 = vld [vmem:[%s1082 + $0x250] sm:$0xff]
      %v1158 = vld [vmem:[%s1082 + $0x258] sm:$0xff]
      %v1159 = vld [vmem:[%s1082 + $0x260] sm:$0xff]
      %v1160 = vld [vmem:[%s1082 + $0x268] sm:$0xff]
      %v1161 = vld [vmem:[%s1082 + $0x270] sm:$0xff]
      %v1162 = vld [vmem:[%s1082 + $0x278] sm:$0xff]
      %v1163 = vld [vmem:[%s1082 + $0x280] sm:$0xff]
      %v1164 = vld [vmem:[%s1082 + $0x288] sm:$0xff]
      %v1165 = vld [vmem:[%s1082 + $0x290] sm:$0xff]
      %v1166 = vld [vmem:[%s1082 + $0x298] sm:$0xff]
      %v1167 = vld [vmem:[%s1082 + $0x2a0] sm:$0xff]
      %v1168 = vld [vmem:[%s1082 + $0x2a8] sm:$0xff]
      %v1169 = vld [vmem:[%s1082 + $0x2b0] sm:$0xff]
      %v1170 = vld [vmem:[%s1082 + $0x2b8] sm:$0xff]
      %v1171 = vld [vmem:[%s1082 + $0x2c0] sm:$0xff]
      %v1172 = vld [vmem:[%s1082 + $0x2c8] sm:$0xff]
      %v1173 = vld [vmem:[%s1082 + $0x2d0] sm:$0xff]
      %v1174 = vld [vmem:[%s1082 + $0x2d8] sm:$0xff]
      %v1175 = vld [vmem:[%s1082 + $0x2e0] sm:$0xff]
      %v1176 = vld [vmem:[%s1082 + $0x2e8] sm:$0xff]
      %v1177 = vld [vmem:[%s1082 + $0x2f0] sm:$0xff]
      %v1178 = vld [vmem:[%s1082 + $0x2f8] sm:$0xff]
      %v1179 = vld [vmem:[%s1082 + $0x300] sm:$0xff]
      %v1180 = vld [vmem:[%s1082 + $0x308] sm:$0xff]
      %v1181 = vld [vmem:[%s1082 + $0x310] sm:$0xff]
      %v1182 = vld [vmem:[%s1082 + $0x318] sm:$0xff]
      %v1183 = vld [vmem:[%s1082 + $0x320] sm:$0xff]
      %v1184 = vld [vmem:[%s1082 + $0x328] sm:$0xff]
      %v1185 = vld [vmem:[%s1082 + $0x330] sm:$0xff]
      %v1186 = vld [vmem:[%s1082 + $0x338] sm:$0xff]
      %v1187 = vld [vmem:[%s1082 + $0x340] sm:$0xff]
      %v1188 = vld [vmem:[%s1082 + $0x348] sm:$0xff]
      %v1189 = vld [vmem:[%s1082 + $0x350] sm:$0xff]
      %v1190 = vld [vmem:[%s1082 + $0x358] sm:$0xff]
      %v1191 = vld [vmem:[%s1082 + $0x360] sm:$0xff]
      %v1192 = vld [vmem:[%s1082 + $0x368] sm:$0xff]
      %v1193 = vld [vmem:[%s1082 + $0x370] sm:$0xff]
      %v1194 = vld [vmem:[%s1082 + $0x378] sm:$0xff]
      %v1195 = vld [vmem:[%s1082 + $0x380] sm:$0xff]
      %v1196 = vld [vmem:[%s1082 + $0x388] sm:$0xff]
      %v1197 = vld [vmem:[%s1082 + $0x390] sm:$0xff]
      %v1198 = vld [vmem:[%s1082 + $0x398] sm:$0xff]
      %v1199 = vld [vmem:[%s1082 + $0x3a0] sm:$0xff]
      %v1200 = vld [vmem:[%s1082 + $0x3a8] sm:$0xff]
      %v1201 = vld [vmem:[%s1082 + $0x3b0] sm:$0xff]
      %v1202 = vld [vmem:[%s1082 + $0x3b8] sm:$0xff]
      %v1203 = vld [vmem:[%s1082 + $0x3c0] sm:$0xff]
      %v1204 = vld [vmem:[%s1082 + $0x3c8] sm:$0xff]
      %v1205 = vld [vmem:[%s1082 + $0x3d0] sm:$0xff]
      %v1206 = vld [vmem:[%s1082 + $0x3d8] sm:$0xff]
      %v1207 = vld [vmem:[%s1082 + $0x3e0] sm:$0xff]
      %v1208 = vld [vmem:[%s1082 + $0x3e8] sm:$0xff]
      %v1209 = vld [vmem:[%s1082 + $0x3f0] sm:$0xff]
      %v1210 = vld [vmem:[%s1082 + $0x3f8] sm:$0xff]
      %vm1231 = vcmask 1046528
      %v1232 = vrot.slane %v1074, 1
      %v1233 = vrot.slane %v934, 1
      %v1234 = vsel %vm1231, %v1232, %v1233
      %v1235 = vrot.slane %v1075, 1
      %v1236 = vrot.slane %v935, 1
      %v1237 = vsel %vm1231, %v1235, %v1236
      %v1238 = vrot.slane %v1076, 1
      %v1239 = vrot.slane %v936, 1
      %v1240 = vsel %vm1231, %v1238, %v1239
      %v1241 = vrot.slane %v1077, 1
      %v1242 = vrot.slane %v937, 1
      %v1243 = vsel %vm1231, %v1241, %v1242
      %v1244 = vrot.slane %v938, 1
      %v1245 = vsel %vm1231, %v1233, %v1244
      %v1246 = vrot.slane %v939, 1
      %v1247 = vsel %vm1231, %v1236, %v1246
      %v1248 = vrot.slane %v940, 1
      %v1249 = vsel %vm1231, %v1239, %v1248
      %v1250 = vrot.slane %v941, 1
      %v1251 = vsel %vm1231, %v1242, %v1250
      %v1252 = vrot.slane %v942, 1
      %v1253 = vsel %vm1231, %v1244, %v1252
      %v1254 = vrot.slane %v943, 1
      %v1255 = vsel %vm1231, %v1246, %v1254
      %v1256 = vrot.slane %v944, 1
      %v1257 = vsel %vm1231, %v1248, %v1256
      %v1258 = vrot.slane %v945, 1
      %v1259 = vsel %vm1231, %v1250, %v1258
      %v1260 = vrot.slane %v1078, 1
      %v1261 = vsel %vm1231, %v1252, %v1260
      %v1262 = vrot.slane %v1079, 1
      %v1263 = vsel %vm1231, %v1254, %v1262
      %v1264 = vrot.slane %v1080, 1
      %v1265 = vsel %vm1231, %v1256, %v1264
      %v1266 = vrot.slane %v1081, 1
      %v1267 = vsel %vm1231, %v1258, %v1266
      %1284 = vmatpush.msra.mxu0 %v1113
      %1285 = vmatpush.msra.mxu0 %v1111
      %1286 = vmatpush.msra.mxu0 %v1109
      %1287 = vmatpush.msra.mxu0 %v1107
      %1288 = vmatpush.msra.mxu0 %v1105
      %1289 = vmatpush.msra.mxu0 %v1103
      %1290 = vmatpush.msra.mxu0 %v1101
      %1291 = vmatpush.msra.mxu0 %v1099
      %1292 = vmatpush.msra.mxu0 %v1097
      %1293 = vmatpush.msra.mxu0 %v1095
      %1294 = vmatpush.msra.mxu0 %v1093
      %1295 = vmatpush.msra.mxu0 %v1091
      %1296 = vmatpush.msra.mxu0 %v1089
      %1297 = vmatpush.msra.mxu0 %v1087
      %1298 = vmatpush.msra.mxu0 %v1085
      %1299 = vmatpush.msra.mxu0 %v1083
      %1300 = vmatmul.f32.gmra.mxu0 %v1234
      %v1301 = vpop.f32.mrf.mxu0
      %v1302 = vadd.f32 0.0, %v1301
      %1303 = vmatmul.f32.gmra.mxu0 %v1245
      %v1304 = vpop.f32.mrf.mxu0
      %v1305 = vadd.f32 0.0, %v1304
      %1306 = vmatmul.f32.gmra.mxu0 %v1253
      %v1307 = vpop.f32.mrf.mxu0
      %v1308 = vadd.f32 0.0, %v1307
      %1309 = vmatmul.f32.gmra.mxu0 %v1261
      %v1310 = vpop.f32.mrf.mxu0
      %v1311 = vadd.f32 0.0, %v1310
      %1312 = vdwg.mxu0
      %1313 = vmatpush.msra.mxu0 %v1145
      %1314 = vmatpush.msra.mxu0 %v1143
      %1315 = vmatpush.msra.mxu0 %v1141
      %1316 = vmatpush.msra.mxu0 %v1139
      %1317 = vmatpush.msra.mxu0 %v1137
      %1318 = vmatpush.msra.mxu0 %v1135
      %1319 = vmatpush.msra.mxu0 %v1133
      %1320 = vmatpush.msra.mxu0 %v1131
      %1321 = vmatpush.msra.mxu0 %v1129
      %1322 = vmatpush.msra.mxu0 %v1127
      %1323 = vmatpush.msra.mxu0 %v1125
      %1324 = vmatpush.msra.mxu0 %v1123
      %1325 = vmatpush.msra.mxu0 %v1121
      %1326 = vmatpush.msra.mxu0 %v1119
      %1327 = vmatpush.msra.mxu0 %v1117
      %1328 = vmatpush.msra.mxu0 %v1115
      %1329 = vmatmul.f32.gmra.mxu0 %v1237
      %v1330 = vpop.f32.mrf.mxu0
      %v1331 = vadd.f32 %v1302, %v1330
      %1332 = vmatmul.f32.gmra.mxu0 %v1247
      %v1333 = vpop.f32.mrf.mxu0
      %v1334 = vadd.f32 %v1305, %v1333
      %1335 = vmatmul.f32.gmra.mxu0 %v1255
      %v1336 = vpop.f32.mrf.mxu0
      %v1337 = vadd.f32 %v1308, %v1336
      %1338 = vmatmul.f32.gmra.mxu0 %v1263
      %v1339 = vpop.f32.mrf.mxu0
      %v1340 = vadd.f32 %v1311, %v1339
      %1341 = vdwg.mxu0
      %1342 = vmatpush.msra.mxu0 %v1177
      %1343 = vmatpush.msra.mxu0 %v1175
      %1344 = vmatpush.msra.mxu0 %v1173
      %1345 = vmatpush.msra.mxu0 %v1171
      %1346 = vmatpush.msra.mxu0 %v1169
      %1347 = vmatpush.msra.mxu0 %v1167
      %1348 = vmatpush.msra.mxu0 %v1165
      %1349 = vmatpush.msra.mxu0 %v1163
      %1350 = vmatpush.msra.mxu0 %v1161
      %1351 = vmatpush.msra.mxu0 %v1159
      %1352 = vmatpush.msra.mxu0 %v1157
      %1353 = vmatpush.msra.mxu0 %v1155
      %1354 = vmatpush.msra.mxu0 %v1153
      %1355 = vmatpush.msra.mxu0 %v1151
      %1356 = vmatpush.msra.mxu0 %v1149
      %1357 = vmatpush.msra.mxu0 %v1147
      %1358 = vmatmul.f32.gmra.mxu0 %v1240
      %v1359 = vpop.f32.mrf.mxu0
      %v1360 = vadd.f32 %v1331, %v1359
      %1361 = vmatmul.f32.gmra.mxu0 %v1249
      %v1362 = vpop.f32.mrf.mxu0
      %v1363 = vadd.f32 %v1334, %v1362
      %1364 = vmatmul.f32.gmra.mxu0 %v1257
      %v1365 = vpop.f32.mrf.mxu0
      %v1366 = vadd.f32 %v1337, %v1365
      %1367 = vmatmul.f32.gmra.mxu0 %v1265
      %v1368 = vpop.f32.mrf.mxu0
      %v1369 = vadd.f32 %v1340, %v1368
      %1370 = vdwg.mxu0
      %1371 = vmatpush.msra.mxu0 %v1209
      %1372 = vmatpush.msra.mxu0 %v1207
      %1373 = vmatpush.msra.mxu0 %v1205
      %1374 = vmatpush.msra.mxu0 %v1203
      %1375 = vmatpush.msra.mxu0 %v1201
      %1376 = vmatpush.msra.mxu0 %v1199
      %1377 = vmatpush.msra.mxu0 %v1197
      %1378 = vmatpush.msra.mxu0 %v1195
      %1379 = vmatpush.msra.mxu0 %v1193
      %1380 = vmatpush.msra.mxu0 %v1191
      %1381 = vmatpush.msra.mxu0 %v1189
      %1382 = vmatpush.msra.mxu0 %v1187
      %1383 = vmatpush.msra.mxu0 %v1185
      %1384 = vmatpush.msra.mxu0 %v1183
      %1385 = vmatpush.msra.mxu0 %v1181
      %1386 = vmatpush.msra.mxu0 %v1179
      %1387 = vmatmul.f32.gmra.mxu0 %v1243
      %v1388 = vpop.f32.mrf.mxu0
      %v1389 = vadd.f32 %v1360, %v1388
      %1390 = vmatmul.f32.gmra.mxu0 %v1251
      %v1391 = vpop.f32.mrf.mxu0
      %v1392 = vadd.f32 %v1363, %v1391
      %1393 = vmatmul.f32.gmra.mxu0 %v1259
      %v1394 = vpop.f32.mrf.mxu0
      %v1395 = vadd.f32 %v1366, %v1394
      %1396 = vmatmul.f32.gmra.mxu0 %v1267
      %v1397 = vpop.f32.mrf.mxu0
      %v1398 = vadd.f32 %v1369, %v1397
      %1399 = vdwg.mxu0
      %1400 = vmatpush.msra.mxu0 %v1114
      %1401 = vmatpush.msra.mxu0 %v1112
      %1402 = vmatpush.msra.mxu0 %v1110
      %1403 = vmatpush.msra.mxu0 %v1108
      %1404 = vmatpush.msra.mxu0 %v1106
      %1405 = vmatpush.msra.mxu0 %v1104
      %1406 = vmatpush.msra.mxu0 %v1102
      %1407 = vmatpush.msra.mxu0 %v1100
      %1408 = vmatpush.msra.mxu0 %v1098
      %1409 = vmatpush.msra.mxu0 %v1096
      %1410 = vmatpush.msra.mxu0 %v1094
      %1411 = vmatpush.msra.mxu0 %v1092
      %1412 = vmatpush.msra.mxu0 %v1090
      %1413 = vmatpush.msra.mxu0 %v1088
      %1414 = vmatpush.msra.mxu0 %v1086
      %1415 = vmatpush.msra.mxu0 %v1084
      %1416 = vmatmul.f32.gmra.mxu0 %v1234
      %v1417 = vpop.f32.mrf.mxu0
      %v1418 = vadd.f32 0.0, %v1417
      %1419 = vmatmul.f32.gmra.mxu0 %v1245
      %v1420 = vpop.f32.mrf.mxu0
      %v1421 = vadd.f32 0.0, %v1420
      %1422 = vmatmul.f32.gmra.mxu0 %v1253
      %v1423 = vpop.f32.mrf.mxu0
      %v1424 = vadd.f32 0.0, %v1423
      %1425 = vmatmul.f32.gmra.mxu0 %v1261
      %v1426 = vpop.f32.mrf.mxu0
      %v1427 = vadd.f32 0.0, %v1426
      %1428 = vdwg.mxu0
      %1429 = vmatpush.msra.mxu0 %v1146
      %1430 = vmatpush.msra.mxu0 %v1144
      %1431 = vmatpush.msra.mxu0 %v1142
      %1432 = vmatpush.msra.mxu0 %v1140
      %1433 = vmatpush.msra.mxu0 %v1138
      %1434 = vmatpush.msra.mxu0 %v1136
      %1435 = vmatpush.msra.mxu0 %v1134
      %1436 = vmatpush.msra.mxu0 %v1132
      %1437 = vmatpush.msra.mxu0 %v1130
      %1438 = vmatpush.msra.mxu0 %v1128
      %1439 = vmatpush.msra.mxu0 %v1126
      %1440 = vmatpush.msra.mxu0 %v1124
      %1441 = vmatpush.msra.mxu0 %v1122
      %1442 = vmatpush.msra.mxu0 %v1120
      %1443 = vmatpush.msra.mxu0 %v1118
      %1444 = vmatpush.msra.mxu0 %v1116
      %1445 = vmatmul.f32.gmra.mxu0 %v1237
      %v1446 = vpop.f32.mrf.mxu0
      %v1447 = vadd.f32 %v1418, %v1446
      %1448 = vmatmul.f32.gmra.mxu0 %v1247
      %v1449 = vpop.f32.mrf.mxu0
      %v1450 = vadd.f32 %v1421, %v1449
      %1451 = vmatmul.f32.gmra.mxu0 %v1255
      %v1452 = vpop.f32.mrf.mxu0
      %v1453 = vadd.f32 %v1424, %v1452
      %1454 = vmatmul.f32.gmra.mxu0 %v1263
      %v1455 = vpop.f32.mrf.mxu0
      %v1456 = vadd.f32 %v1427, %v1455
      %1457 = vdwg.mxu0
      %1458 = vmatpush.msra.mxu0 %v1178
      %1459 = vmatpush.msra.mxu0 %v1176
      %1460 = vmatpush.msra.mxu0 %v1174
      %1461 = vmatpush.msra.mxu0 %v1172
      %1462 = vmatpush.msra.mxu0 %v1170
      %1463 = vmatpush.msra.mxu0 %v1168
      %1464 = vmatpush.msra.mxu0 %v1166
      %1465 = vmatpush.msra.mxu0 %v1164
      %1466 = vmatpush.msra.mxu0 %v1162
      %1467 = vmatpush.msra.mxu0 %v1160
      %1468 = vmatpush.msra.mxu0 %v1158
      %1469 = vmatpush.msra.mxu0 %v1156
      %1470 = vmatpush.msra.mxu0 %v1154
      %1471 = vmatpush.msra.mxu0 %v1152
      %1472 = vmatpush.msra.mxu0 %v1150
      %1473 = vmatpush.msra.mxu0 %v1148
      %1474 = vmatmul.f32.gmra.mxu0 %v1240
      %v1475 = vpop.f32.mrf.mxu0
      %v1476 = vadd.f32 %v1447, %v1475
      %1477 = vmatmul.f32.gmra.mxu0 %v1249
      %v1478 = vpop.f32.mrf.mxu0
      %v1479 = vadd.f32 %v1450, %v1478
      %1480 = vmatmul.f32.gmra.mxu0 %v1257
      %v1481 = vpop.f32.mrf.mxu0
      %v1482 = vadd.f32 %v1453, %v1481
      %1483 = vmatmul.f32.gmra.mxu0 %v1265
      %v1484 = vpop.f32.mrf.mxu0
      %v1485 = vadd.f32 %v1456, %v1484
      %1486 = vdwg.mxu0
      %1487 = vmatpush.msra.mxu0 %v1210
      %1488 = vmatpush.msra.mxu0 %v1208
      %1489 = vmatpush.msra.mxu0 %v1206
      %1490 = vmatpush.msra.mxu0 %v1204
      %1491 = vmatpush.msra.mxu0 %v1202
      %1492 = vmatpush.msra.mxu0 %v1200
      %1493 = vmatpush.msra.mxu0 %v1198
      %1494 = vmatpush.msra.mxu0 %v1196
      %1495 = vmatpush.msra.mxu0 %v1194
      %1496 = vmatpush.msra.mxu0 %v1192
      %1497 = vmatpush.msra.mxu0 %v1190
      %1498 = vmatpush.msra.mxu0 %v1188
      %1499 = vmatpush.msra.mxu0 %v1186
      %1500 = vmatpush.msra.mxu0 %v1184
      %1501 = vmatpush.msra.mxu0 %v1182
      %1502 = vmatpush.msra.mxu0 %v1180
      %1503 = vmatmul.f32.gmra.mxu0 %v1243
      %v1504 = vpop.f32.mrf.mxu0
      %v1505 = vadd.f32 %v1476, %v1504
      %1506 = vmatmul.f32.gmra.mxu0 %v1251
      %v1507 = vpop.f32.mrf.mxu0
      %v1508 = vadd.f32 %v1479, %v1507
      %1509 = vmatmul.f32.gmra.mxu0 %v1259
      %v1510 = vpop.f32.mrf.mxu0
      %v1511 = vadd.f32 %v1482, %v1510
      %1512 = vmatmul.f32.gmra.mxu0 %v1267
      %v1513 = vpop.f32.mrf.mxu0
      %v1514 = vadd.f32 %v1485, %v1513
      %1515 = vdwg.mxu0
      %1516 = vmatpush.msra.mxu0 %v976
      %1517 = vmatpush.msra.mxu0 %v974
      %1518 = vmatpush.msra.mxu0 %v972
      %1519 = vmatpush.msra.mxu0 %v970
      %1520 = vmatpush.msra.mxu0 %v968
      %1521 = vmatpush.msra.mxu0 %v966
      %1522 = vmatpush.msra.mxu0 %v964
      %1523 = vmatpush.msra.mxu0 %v962
      %1524 = vmatpush.msra.mxu0 %v960
      %1525 = vmatpush.msra.mxu0 %v958
      %1526 = vmatpush.msra.mxu0 %v956
      %1527 = vmatpush.msra.mxu0 %v954
      %1528 = vmatpush.msra.mxu0 %v952
      %1529 = vmatpush.msra.mxu0 %v950
      %1530 = vmatpush.msra.mxu0 %v948
      %1531 = vmatpush.msra.mxu0 %v946
      %1532 = vmatmul.f32.gmra.mxu0 %v930
      %v1533 = vpop.f32.mrf.mxu0
      %v1534 = vadd.f32 %v1389, %v1533
      %1535 = vmatmul.f32.gmra.mxu0 %v934
      %v1536 = vpop.f32.mrf.mxu0
      %v1537 = vadd.f32 %v1392, %v1536
      %1538 = vmatmul.f32.gmra.mxu0 %v938
      %v1539 = vpop.f32.mrf.mxu0
      %v1540 = vadd.f32 %v1395, %v1539
      %1541 = vmatmul.f32.gmra.mxu0 %v942
      %v1542 = vpop.f32.mrf.mxu0
      %v1543 = vadd.f32 %v1398, %v1542
      %1544 = vdwg.mxu0
      %1545 = vmatpush.msra.mxu0 %v1008
      %1546 = vmatpush.msra.mxu0 %v1006
      %1547 = vmatpush.msra.mxu0 %v1004
      %1548 = vmatpush.msra.mxu0 %v1002
      %1549 = vmatpush.msra.mxu0 %v1000
      %1550 = vmatpush.msra.mxu0 %v998
      %1551 = vmatpush.msra.mxu0 %v996
      %1552 = vmatpush.msra.mxu0 %v994
      %1553 = vmatpush.msra.mxu0 %v992
      %1554 = vmatpush.msra.mxu0 %v990
      %1555 = vmatpush.msra.mxu0 %v988
      %1556 = vmatpush.msra.mxu0 %v986
      %1557 = vmatpush.msra.mxu0 %v984
      %1558 = vmatpush.msra.mxu0 %v982
      %1559 = vmatpush.msra.mxu0 %v980
      %1560 = vmatpush.msra.mxu0 %v978
      %1561 = vmatmul.f32.gmra.mxu0 %v931
      %v1562 = vpop.f32.mrf.mxu0
      %v1563 = vadd.f32 %v1534, %v1562
      %1564 = vmatmul.f32.gmra.mxu0 %v935
      %v1565 = vpop.f32.mrf.mxu0
      %v1566 = vadd.f32 %v1537, %v1565
      %1567 = vmatmul.f32.gmra.mxu0 %v939
      %v1568 = vpop.f32.mrf.mxu0
      %v1569 = vadd.f32 %v1540, %v1568
      %1570 = vmatmul.f32.gmra.mxu0 %v943
      %v1571 = vpop.f32.mrf.mxu0
      %v1572 = vadd.f32 %v1543, %v1571
      %1573 = vdwg.mxu0
      %1574 = vmatpush.msra.mxu0 %v1040
      %1575 = vmatpush.msra.mxu0 %v1038
      %1576 = vmatpush.msra.mxu0 %v1036
      %1577 = vmatpush.msra.mxu0 %v1034
      %1578 = vmatpush.msra.mxu0 %v1032
      %1579 = vmatpush.msra.mxu0 %v1030
      %1580 = vmatpush.msra.mxu0 %v1028
      %1581 = vmatpush.msra.mxu0 %v1026
      %1582 = vmatpush.msra.mxu0 %v1024
      %1583 = vmatpush.msra.mxu0 %v1022
      %1584 = vmatpush.msra.mxu0 %v1020
      %1585 = vmatpush.msra.mxu0 %v1018
      %1586 = vmatpush.msra.mxu0 %v1016
      %1587 = vmatpush.msra.mxu0 %v1014
      %1588 = vmatpush.msra.mxu0 %v1012
      %1589 = vmatpush.msra.mxu0 %v1010
      %1590 = vmatmul.f32.gmra.mxu0 %v932
      %v1591 = vpop.f32.mrf.mxu0
      %v1592 = vadd.f32 %v1563, %v1591
      %1593 = vmatmul.f32.gmra.mxu0 %v936
      %v1594 = vpop.f32.mrf.mxu0
      %v1595 = vadd.f32 %v1566, %v1594
      %1596 = vmatmul.f32.gmra.mxu0 %v940
      %v1597 = vpop.f32.mrf.mxu0
      %v1598 = vadd.f32 %v1569, %v1597
      %1599 = vmatmul.f32.gmra.mxu0 %v944
      %v1600 = vpop.f32.mrf.mxu0
      %v1601 = vadd.f32 %v1572, %v1600
      %1602 = vdwg.mxu0
      %1603 = vmatpush.msra.mxu0 %v1072
      %1604 = vmatpush.msra.mxu0 %v1070
      %1605 = vmatpush.msra.mxu0 %v1068
      %1606 = vmatpush.msra.mxu0 %v1066
      %1607 = vmatpush.msra.mxu0 %v1064
      %1608 = vmatpush.msra.mxu0 %v1062
      %1609 = vmatpush.msra.mxu0 %v1060
      %1610 = vmatpush.msra.mxu0 %v1058
      %1611 = vmatpush.msra.mxu0 %v1056
      %1612 = vmatpush.msra.mxu0 %v1054
      %1613 = vmatpush.msra.mxu0 %v1052
      %1614 = vmatpush.msra.mxu0 %v1050
      %1615 = vmatpush.msra.mxu0 %v1048
      %1616 = vmatpush.msra.mxu0 %v1046
      %1617 = vmatpush.msra.mxu0 %v1044
      %1618 = vmatpush.msra.mxu0 %v1042
      %1619 = vmatmul.f32.gmra.mxu0 %v933
      %v1620 = vpop.f32.mrf.mxu0
      %v1621 = vadd.f32 %v1592, %v1620
      %1622 = vmatmul.f32.gmra.mxu0 %v937
      %v1623 = vpop.f32.mrf.mxu0
      %v1624 = vadd.f32 %v1595, %v1623
      %1625 = vmatmul.f32.gmra.mxu0 %v941
      %v1626 = vpop.f32.mrf.mxu0
      %v1627 = vadd.f32 %v1598, %v1626
      %1628 = vmatmul.f32.gmra.mxu0 %v945
      %v1629 = vpop.f32.mrf.mxu0
      %v1630 = vadd.f32 %v1601, %v1629
      %1631 = vdwg.mxu0
      %1632 = vmatpush.msra.mxu0 %v977
      %1633 = vmatpush.msra.mxu0 %v975
      %1634 = vmatpush.msra.mxu0 %v973
      %1635 = vmatpush.msra.mxu0 %v971
      %1636 = vmatpush.msra.mxu0 %v969
      %1637 = vmatpush.msra.mxu0 %v967
      %1638 = vmatpush.msra.mxu0 %v965
      %1639 = vmatpush.msra.mxu0 %v963
      %1640 = vmatpush.msra.mxu0 %v961
      %1641 = vmatpush.msra.mxu0 %v959
      %1642 = vmatpush.msra.mxu0 %v957
      %1643 = vmatpush.msra.mxu0 %v955
      %1644 = vmatpush.msra.mxu0 %v953
      %1645 = vmatpush.msra.mxu0 %v951
      %1646 = vmatpush.msra.mxu0 %v949
      %1647 = vmatpush.msra.mxu0 %v947
      %1648 = vmatmul.f32.gmra.mxu0 %v930
      %v1649 = vpop.f32.mrf.mxu0
      %v1650 = vadd.f32 %v1505, %v1649
      %1651 = vmatmul.f32.gmra.mxu0 %v934
      %v1652 = vpop.f32.mrf.mxu0
      %v1653 = vadd.f32 %v1508, %v1652
      %1654 = vmatmul.f32.gmra.mxu0 %v938
      %v1655 = vpop.f32.mrf.mxu0
      %v1656 = vadd.f32 %v1511, %v1655
      %1657 = vmatmul.f32.gmra.mxu0 %v942
      %v1658 = vpop.f32.mrf.mxu0
      %v1659 = vadd.f32 %v1514, %v1658
      %1660 = vdwg.mxu0
      %1661 = vmatpush.msra.mxu0 %v1009
      %1662 = vmatpush.msra.mxu0 %v1007
      %1663 = vmatpush.msra.mxu0 %v1005
      %1664 = vmatpush.msra.mxu0 %v1003
      %1665 = vmatpush.msra.mxu0 %v1001
      %1666 = vmatpush.msra.mxu0 %v999
      %1667 = vmatpush.msra.mxu0 %v997
      %1668 = vmatpush.msra.mxu0 %v995
      %1669 = vmatpush.msra.mxu0 %v993
      %1670 = vmatpush.msra.mxu0 %v991
      %1671 = vmatpush.msra.mxu0 %v989
      %1672 = vmatpush.msra.mxu0 %v987
      %1673 = vmatpush.msra.mxu0 %v985
      %1674 = vmatpush.msra.mxu0 %v983
      %1675 = vmatpush.msra.mxu0 %v981
      %1676 = vmatpush.msra.mxu0 %v979
      %1677 = vmatmul.f32.gmra.mxu0 %v931
      %v1678 = vpop.f32.mrf.mxu0
      %v1679 = vadd.f32 %v1650, %v1678
      %1680 = vmatmul.f32.gmra.mxu0 %v935
      %v1681 = vpop.f32.mrf.mxu0
      %v1682 = vadd.f32 %v1653, %v1681
      %1683 = vmatmul.f32.gmra.mxu0 %v939
      %v1684 = vpop.f32.mrf.mxu0
      %v1685 = vadd.f32 %v1656, %v1684
      %1686 = vmatmul.f32.gmra.mxu0 %v943
      %v1687 = vpop.f32.mrf.mxu0
      %v1688 = vadd.f32 %v1659, %v1687
      %1689 = vdwg.mxu0
      %1690 = vmatpush.msra.mxu0 %v1041
      %1691 = vmatpush.msra.mxu0 %v1039
      %1692 = vmatpush.msra.mxu0 %v1037
      %1693 = vmatpush.msra.mxu0 %v1035
      %1694 = vmatpush.msra.mxu0 %v1033
      %1695 = vmatpush.msra.mxu0 %v1031
      %1696 = vmatpush.msra.mxu0 %v1029
      %1697 = vmatpush.msra.mxu0 %v1027
      %1698 = vmatpush.msra.mxu0 %v1025
      %1699 = vmatpush.msra.mxu0 %v1023
      %1700 = vmatpush.msra.mxu0 %v1021
      %1701 = vmatpush.msra.mxu0 %v1019
      %1702 = vmatpush.msra.mxu0 %v1017
      %1703 = vmatpush.msra.mxu0 %v1015
      %1704 = vmatpush.msra.mxu0 %v1013
      %1705 = vmatpush.msra.mxu0 %v1011
      %1706 = vmatmul.f32.gmra.mxu0 %v932
      %v1707 = vpop.f32.mrf.mxu0
      %v1708 = vadd.f32 %v1679, %v1707
      %1709 = vmatmul.f32.gmra.mxu0 %v936
      %v1710 = vpop.f32.mrf.mxu0
      %v1711 = vadd.f32 %v1682, %v1710
      %1712 = vmatmul.f32.gmra.mxu0 %v940
      %v1713 = vpop.f32.mrf.mxu0
      %v1714 = vadd.f32 %v1685, %v1713
      %1715 = vmatmul.f32.gmra.mxu0 %v944
      %v1716 = vpop.f32.mrf.mxu0
      %v1717 = vadd.f32 %v1688, %v1716
      %1718 = vdwg.mxu0
      %1719 = vmatpush.msra.mxu0 %v1073
      %1720 = vmatpush.msra.mxu0 %v1071
      %1721 = vmatpush.msra.mxu0 %v1069
      %1722 = vmatpush.msra.mxu0 %v1067
      %1723 = vmatpush.msra.mxu0 %v1065
      %1724 = vmatpush.msra.mxu0 %v1063
      %1725 = vmatpush.msra.mxu0 %v1061
      %1726 = vmatpush.msra.mxu0 %v1059
      %1727 = vmatpush.msra.mxu0 %v1057
      %1728 = vmatpush.msra.mxu0 %v1055
      %1729 = vmatpush.msra.mxu0 %v1053
      %1730 = vmatpush.msra.mxu0 %v1051
      %1731 = vmatpush.msra.mxu0 %v1049
      %1732 = vmatpush.msra.mxu0 %v1047
      %1733 = vmatpush.msra.mxu0 %v1045
      %1734 = vmatpush.msra.mxu0 %v1043
      %1735 = vmatmul.f32.gmra.mxu0 %v933
      %v1736 = vpop.f32.mrf.mxu0
      %v1737 = vadd.f32 %v1708, %v1736
      %1738 = vmatmul.f32.gmra.mxu0 %v937
      %v1739 = vpop.f32.mrf.mxu0
      %v1740 = vadd.f32 %v1711, %v1739
      %1741 = vmatmul.f32.gmra.mxu0 %v941
      %v1742 = vpop.f32.mrf.mxu0
      %v1743 = vadd.f32 %v1714, %v1742
      %1744 = vmatmul.f32.gmra.mxu0 %v945
      %v1745 = vpop.f32.mrf.mxu0
      %v1746 = vadd.f32 %v1717, %v1745
      %1747 = vdwg.mxu0
      %v1748 = vld [vmem:[#allocation3] sm:$0xfc]
      %v1749 = vld [vmem:[#allocation3 + $0x8] sm:$0xfc]
      %v1750 = vld [vmem:[#allocation3 + $0x10] sm:$0xfc]
      %v1751 = vld [vmem:[#allocation3 + $0x18] sm:$0xfc]
      %v1752 = vld [vmem:[#allocation3 + $0x80] sm:$0x3]
      %v1753 = vld [vmem:[#allocation3 + $0x88] sm:$0x3]
      %v1754 = vld [vmem:[#allocation3 + $0x90] sm:$0x3]
      %v1755 = vld [vmem:[#allocation3 + $0x98] sm:$0x3]
      %s1756 = scalar_lea.vmem %s4, 2048
      %v1757 = vld [vmem:[%s1756] sm:$0xff]
      %v1758 = vld [vmem:[%s1756 + $0x8] sm:$0xff]
      %v1759 = vld [vmem:[%s1756 + $0x10] sm:$0xff]
      %v1760 = vld [vmem:[%s1756 + $0x18] sm:$0xff]
      %v1761 = vld [vmem:[%s1756 + $0x20] sm:$0xff]
      %v1762 = vld [vmem:[%s1756 + $0x28] sm:$0xff]
      %v1763 = vld [vmem:[%s1756 + $0x30] sm:$0xff]
      %v1764 = vld [vmem:[%s1756 + $0x38] sm:$0xff]
      %v1765 = vld [vmem:[%s1756 + $0x40] sm:$0xff]
      %v1766 = vld [vmem:[%s1756 + $0x48] sm:$0xff]
      %v1767 = vld [vmem:[%s1756 + $0x50] sm:$0xff]
      %v1768 = vld [vmem:[%s1756 + $0x58] sm:$0xff]
      %v1769 = vld [vmem:[%s1756 + $0x60] sm:$0xff]
      %v1770 = vld [vmem:[%s1756 + $0x68] sm:$0xff]
      %v1771 = vld [vmem:[%s1756 + $0x70] sm:$0xff]
      %v1772 = vld [vmem:[%s1756 + $0x78] sm:$0xff]
      %v1773 = vld [vmem:[%s1756 + $0x80] sm:$0xff]
      %v1774 = vld [vmem:[%s1756 + $0x88] sm:$0xff]
      %v1775 = vld [vmem:[%s1756 + $0x90] sm:$0xff]
      %v1776 = vld [vmem:[%s1756 + $0x98] sm:$0xff]
      %v1777 = vld [vmem:[%s1756 + $0xa0] sm:$0xff]
      %v1778 = vld [vmem:[%s1756 + $0xa8] sm:$0xff]
      %v1779 = vld [vmem:[%s1756 + $0xb0] sm:$0xff]
      %v1780 = vld [vmem:[%s1756 + $0xb8] sm:$0xff]
      %v1781 = vld [vmem:[%s1756 + $0xc0] sm:$0xff]
      %v1782 = vld [vmem:[%s1756 + $0xc8] sm:$0xff]
      %v1783 = vld [vmem:[%s1756 + $0xd0] sm:$0xff]
      %v1784 = vld [vmem:[%s1756 + $0xd8] sm:$0xff]
      %v1785 = vld [vmem:[%s1756 + $0xe0] sm:$0xff]
      %v1786 = vld [vmem:[%s1756 + $0xe8] sm:$0xff]
      %v1787 = vld [vmem:[%s1756 + $0xf0] sm:$0xff]
      %v1788 = vld [vmem:[%s1756 + $0xf8] sm:$0xff]
      %v1789 = vld [vmem:[%s1756 + $0x100] sm:$0xff]
      %v1790 = vld [vmem:[%s1756 + $0x108] sm:$0xff]
      %v1791 = vld [vmem:[%s1756 + $0x110] sm:$0xff]
      %v1792 = vld [vmem:[%s1756 + $0x118] sm:$0xff]
      %v1793 = vld [vmem:[%s1756 + $0x120] sm:$0xff]
      %v1794 = vld [vmem:[%s1756 + $0x128] sm:$0xff]
      %v1795 = vld [vmem:[%s1756 + $0x130] sm:$0xff]
      %v1796 = vld [vmem:[%s1756 + $0x138] sm:$0xff]
      %v1797 = vld [vmem:[%s1756 + $0x140] sm:$0xff]
      %v1798 = vld [vmem:[%s1756 + $0x148] sm:$0xff]
      %v1799 = vld [vmem:[%s1756 + $0x150] sm:$0xff]
      %v1800 = vld [vmem:[%s1756 + $0x158] sm:$0xff]
      %v1801 = vld [vmem:[%s1756 + $0x160] sm:$0xff]
      %v1802 = vld [vmem:[%s1756 + $0x168] sm:$0xff]
      %v1803 = vld [vmem:[%s1756 + $0x170] sm:$0xff]
      %v1804 = vld [vmem:[%s1756 + $0x178] sm:$0xff]
      %v1805 = vld [vmem:[%s1756 + $0x180] sm:$0xff]
      %v1806 = vld [vmem:[%s1756 + $0x188] sm:$0xff]
      %v1807 = vld [vmem:[%s1756 + $0x190] sm:$0xff]
      %v1808 = vld [vmem:[%s1756 + $0x198] sm:$0xff]
      %v1809 = vld [vmem:[%s1756 + $0x1a0] sm:$0xff]
      %v1810 = vld [vmem:[%s1756 + $0x1a8] sm:$0xff]
      %v1811 = vld [vmem:[%s1756 + $0x1b0] sm:$0xff]
      %v1812 = vld [vmem:[%s1756 + $0x1b8] sm:$0xff]
      %v1813 = vld [vmem:[%s1756 + $0x1c0] sm:$0xff]
      %v1814 = vld [vmem:[%s1756 + $0x1c8] sm:$0xff]
      %v1815 = vld [vmem:[%s1756 + $0x1d0] sm:$0xff]
      %v1816 = vld [vmem:[%s1756 + $0x1d8] sm:$0xff]
      %v1817 = vld [vmem:[%s1756 + $0x1e0] sm:$0xff]
      %v1818 = vld [vmem:[%s1756 + $0x1e8] sm:$0xff]
      %v1819 = vld [vmem:[%s1756 + $0x1f0] sm:$0xff]
      %v1820 = vld [vmem:[%s1756 + $0x1f8] sm:$0xff]
      %v1821 = vld [vmem:[%s1756 + $0x200] sm:$0xff]
      %v1822 = vld [vmem:[%s1756 + $0x208] sm:$0xff]
      %v1823 = vld [vmem:[%s1756 + $0x210] sm:$0xff]
      %v1824 = vld [vmem:[%s1756 + $0x218] sm:$0xff]
      %v1825 = vld [vmem:[%s1756 + $0x220] sm:$0xff]
      %v1826 = vld [vmem:[%s1756 + $0x228] sm:$0xff]
      %v1827 = vld [vmem:[%s1756 + $0x230] sm:$0xff]
      %v1828 = vld [vmem:[%s1756 + $0x238] sm:$0xff]
      %v1829 = vld [vmem:[%s1756 + $0x240] sm:$0xff]
      %v1830 = vld [vmem:[%s1756 + $0x248] sm:$0xff]
      %v1831 = vld [vmem:[%s1756 + $0x250] sm:$0xff]
      %v1832 = vld [vmem:[%s1756 + $0x258] sm:$0xff]
      %v1833 = vld [vmem:[%s1756 + $0x260] sm:$0xff]
      %v1834 = vld [vmem:[%s1756 + $0x268] sm:$0xff]
      %v1835 = vld [vmem:[%s1756 + $0x270] sm:$0xff]
      %v1836 = vld [vmem:[%s1756 + $0x278] sm:$0xff]
      %v1837 = vld [vmem:[%s1756 + $0x280] sm:$0xff]
      %v1838 = vld [vmem:[%s1756 + $0x288] sm:$0xff]
      %v1839 = vld [vmem:[%s1756 + $0x290] sm:$0xff]
      %v1840 = vld [vmem:[%s1756 + $0x298] sm:$0xff]
      %v1841 = vld [vmem:[%s1756 + $0x2a0] sm:$0xff]
      %v1842 = vld [vmem:[%s1756 + $0x2a8] sm:$0xff]
      %v1843 = vld [vmem:[%s1756 + $0x2b0] sm:$0xff]
      %v1844 = vld [vmem:[%s1756 + $0x2b8] sm:$0xff]
      %v1845 = vld [vmem:[%s1756 + $0x2c0] sm:$0xff]
      %v1846 = vld [vmem:[%s1756 + $0x2c8] sm:$0xff]
      %v1847 = vld [vmem:[%s1756 + $0x2d0] sm:$0xff]
      %v1848 = vld [vmem:[%s1756 + $0x2d8] sm:$0xff]
      %v1849 = vld [vmem:[%s1756 + $0x2e0] sm:$0xff]
      %v1850 = vld [vmem:[%s1756 + $0x2e8] sm:$0xff]
      %v1851 = vld [vmem:[%s1756 + $0x2f0] sm:$0xff]
      %v1852 = vld [vmem:[%s1756 + $0x2f8] sm:$0xff]
      %v1853 = vld [vmem:[%s1756 + $0x300] sm:$0xff]
      %v1854 = vld [vmem:[%s1756 + $0x308] sm:$0xff]
      %v1855 = vld [vmem:[%s1756 + $0x310] sm:$0xff]
      %v1856 = vld [vmem:[%s1756 + $0x318] sm:$0xff]
      %v1857 = vld [vmem:[%s1756 + $0x320] sm:$0xff]
      %v1858 = vld [vmem:[%s1756 + $0x328] sm:$0xff]
      %v1859 = vld [vmem:[%s1756 + $0x330] sm:$0xff]
      %v1860 = vld [vmem:[%s1756 + $0x338] sm:$0xff]
      %v1861 = vld [vmem:[%s1756 + $0x340] sm:$0xff]
      %v1862 = vld [vmem:[%s1756 + $0x348] sm:$0xff]
      %v1863 = vld [vmem:[%s1756 + $0x350] sm:$0xff]
      %v1864 = vld [vmem:[%s1756 + $0x358] sm:$0xff]
      %v1865 = vld [vmem:[%s1756 + $0x360] sm:$0xff]
      %v1866 = vld [vmem:[%s1756 + $0x368] sm:$0xff]
      %v1867 = vld [vmem:[%s1756 + $0x370] sm:$0xff]
      %v1868 = vld [vmem:[%s1756 + $0x378] sm:$0xff]
      %v1869 = vld [vmem:[%s1756 + $0x380] sm:$0xff]
      %v1870 = vld [vmem:[%s1756 + $0x388] sm:$0xff]
      %v1871 = vld [vmem:[%s1756 + $0x390] sm:$0xff]
      %v1872 = vld [vmem:[%s1756 + $0x398] sm:$0xff]
      %v1873 = vld [vmem:[%s1756 + $0x3a0] sm:$0xff]
      %v1874 = vld [vmem:[%s1756 + $0x3a8] sm:$0xff]
      %v1875 = vld [vmem:[%s1756 + $0x3b0] sm:$0xff]
      %v1876 = vld [vmem:[%s1756 + $0x3b8] sm:$0xff]
      %v1877 = vld [vmem:[%s1756 + $0x3c0] sm:$0xff]
      %v1878 = vld [vmem:[%s1756 + $0x3c8] sm:$0xff]
      %v1879 = vld [vmem:[%s1756 + $0x3d0] sm:$0xff]
      %v1880 = vld [vmem:[%s1756 + $0x3d8] sm:$0xff]
      %v1881 = vld [vmem:[%s1756 + $0x3e0] sm:$0xff]
      %v1882 = vld [vmem:[%s1756 + $0x3e8] sm:$0xff]
      %v1883 = vld [vmem:[%s1756 + $0x3f0] sm:$0xff]
      %v1884 = vld [vmem:[%s1756 + $0x3f8] sm:$0xff]
      %vm1893 = vcmask 1045504
      %v1894 = vrot.slane %v1748, 2
      %v1895 = vrot.slane %v934, 2
      %v1896 = vsel %vm1893, %v1894, %v1895
      %v1897 = vrot.slane %v1749, 2
      %v1898 = vrot.slane %v935, 2
      %v1899 = vsel %vm1893, %v1897, %v1898
      %v1900 = vrot.slane %v1750, 2
      %v1901 = vrot.slane %v936, 2
      %v1902 = vsel %vm1893, %v1900, %v1901
      %v1903 = vrot.slane %v1751, 2
      %v1904 = vrot.slane %v937, 2
      %v1905 = vsel %vm1893, %v1903, %v1904
      %v1906 = vrot.slane %v938, 2
      %v1907 = vsel %vm1893, %v1895, %v1906
      %v1908 = vrot.slane %v939, 2
      %v1909 = vsel %vm1893, %v1898, %v1908
      %v1910 = vrot.slane %v940, 2
      %v1911 = vsel %vm1893, %v1901, %v1910
      %v1912 = vrot.slane %v941, 2
      %v1913 = vsel %vm1893, %v1904, %v1912
      %v1914 = vrot.slane %v942, 2
      %v1915 = vsel %vm1893, %v1906, %v1914
      %v1916 = vrot.slane %v943, 2
      %v1917 = vsel %vm1893, %v1908, %v1916
      %v1918 = vrot.slane %v944, 2
      %v1919 = vsel %vm1893, %v1910, %v1918
      %v1920 = vrot.slane %v945, 2
      %v1921 = vsel %vm1893, %v1912, %v1920
      %v1922 = vrot.slane %v1752, 2
      %v1923 = vsel %vm1893, %v1914, %v1922
      %v1924 = vrot.slane %v1753, 2
      %v1925 = vsel %vm1893, %v1916, %v1924
      %v1926 = vrot.slane %v1754, 2
      %v1927 = vsel %vm1893, %v1918, %v1926
      %v1928 = vrot.slane %v1755, 2
      %v1929 = vsel %vm1893, %v1920, %v1928
      %1946 = vmatpush.msra.mxu0 %v1787
      %1947 = vmatpush.msra.mxu0 %v1785
      %1948 = vmatpush.msra.mxu0 %v1783
      %1949 = vmatpush.msra.mxu0 %v1781
      %1950 = vmatpush.msra.mxu0 %v1779
      %1951 = vmatpush.msra.mxu0 %v1777
      %1952 = vmatpush.msra.mxu0 %v1775
      %1953 = vmatpush.msra.mxu0 %v1773
      %1954 = vmatpush.msra.mxu0 %v1771
      %1955 = vmatpush.msra.mxu0 %v1769
      %1956 = vmatpush.msra.mxu0 %v1767
      %1957 = vmatpush.msra.mxu0 %v1765
      %1958 = vmatpush.msra.mxu0 %v1763
      %1959 = vmatpush.msra.mxu0 %v1761
      %1960 = vmatpush.msra.mxu0 %v1759
      %1961 = vmatpush.msra.mxu0 %v1757
      %1962 = vmatmul.f32.gmra.mxu0 %v1896
      %v1963 = vpop.f32.mrf.mxu0
      %v1964 = vadd.f32 0.0, %v1963
      %1965 = vmatmul.f32.gmra.mxu0 %v1907
      %v1966 = vpop.f32.mrf.mxu0
      %v1967 = vadd.f32 0.0, %v1966
      %1968 = vmatmul.f32.gmra.mxu0 %v1915
      %v1969 = vpop.f32.mrf.mxu0
      %v1970 = vadd.f32 0.0, %v1969
      %1971 = vmatmul.f32.gmra.mxu0 %v1923
      %v1972 = vpop.f32.mrf.mxu0
      %v1973 = vadd.f32 0.0, %v1972
      %1974 = vdwg.mxu0
      %1975 = vmatpush.msra.mxu0 %v1819
      %1976 = vmatpush.msra.mxu0 %v1817
      %1977 = vmatpush.msra.mxu0 %v1815
      %1978 = vmatpush.msra.mxu0 %v1813
      %1979 = vmatpush.msra.mxu0 %v1811
      %1980 = vmatpush.msra.mxu0 %v1809
      %1981 = vmatpush.msra.mxu0 %v1807
      %1982 = vmatpush.msra.mxu0 %v1805
      %1983 = vmatpush.msra.mxu0 %v1803
      %1984 = vmatpush.msra.mxu0 %v1801
      %1985 = vmatpush.msra.mxu0 %v1799
      %1986 = vmatpush.msra.mxu0 %v1797
      %1987 = vmatpush.msra.mxu0 %v1795
      %1988 = vmatpush.msra.mxu0 %v1793
      %1989 = vmatpush.msra.mxu0 %v1791
      %1990 = vmatpush.msra.mxu0 %v1789
      %1991 = vmatmul.f32.gmra.mxu0 %v1899
      %v1992 = vpop.f32.mrf.mxu0
      %v1993 = vadd.f32 %v1964, %v1992
      %1994 = vmatmul.f32.gmra.mxu0 %v1909
      %v1995 = vpop.f32.mrf.mxu0
      %v1996 = vadd.f32 %v1967, %v1995
      %1997 = vmatmul.f32.gmra.mxu0 %v1917
      %v1998 = vpop.f32.mrf.mxu0
      %v1999 = vadd.f32 %v1970, %v1998
      %2000 = vmatmul.f32.gmra.mxu0 %v1925
      %v2001 = vpop.f32.mrf.mxu0
      %v2002 = vadd.f32 %v1973, %v2001
      %2003 = vdwg.mxu0
      %2004 = vmatpush.msra.mxu0 %v1851
      %2005 = vmatpush.msra.mxu0 %v1849
      %2006 = vmatpush.msra.mxu0 %v1847
      %2007 = vmatpush.msra.mxu0 %v1845
      %2008 = vmatpush.msra.mxu0 %v1843
      %2009 = vmatpush.msra.mxu0 %v1841
      %2010 = vmatpush.msra.mxu0 %v1839
      %2011 = vmatpush.msra.mxu0 %v1837
      %2012 = vmatpush.msra.mxu0 %v1835
      %2013 = vmatpush.msra.mxu0 %v1833
      %2014 = vmatpush.msra.mxu0 %v1831
      %2015 = vmatpush.msra.mxu0 %v1829
      %2016 = vmatpush.msra.mxu0 %v1827
      %2017 = vmatpush.msra.mxu0 %v1825
      %2018 = vmatpush.msra.mxu0 %v1823
      %2019 = vmatpush.msra.mxu0 %v1821
      %2020 = vmatmul.f32.gmra.mxu0 %v1902
      %v2021 = vpop.f32.mrf.mxu0
      %v2022 = vadd.f32 %v1993, %v2021
      %2023 = vmatmul.f32.gmra.mxu0 %v1911
      %v2024 = vpop.f32.mrf.mxu0
      %v2025 = vadd.f32 %v1996, %v2024
      %2026 = vmatmul.f32.gmra.mxu0 %v1919
      %v2027 = vpop.f32.mrf.mxu0
      %v2028 = vadd.f32 %v1999, %v2027
      %2029 = vmatmul.f32.gmra.mxu0 %v1927
      %v2030 = vpop.f32.mrf.mxu0
      %v2031 = vadd.f32 %v2002, %v2030
      %2032 = vdwg.mxu0
      %2033 = vmatpush.msra.mxu0 %v1883
      %2034 = vmatpush.msra.mxu0 %v1881
      %2035 = vmatpush.msra.mxu0 %v1879
      %2036 = vmatpush.msra.mxu0 %v1877
      %2037 = vmatpush.msra.mxu0 %v1875
      %2038 = vmatpush.msra.mxu0 %v1873
      %2039 = vmatpush.msra.mxu0 %v1871
      %2040 = vmatpush.msra.mxu0 %v1869
      %2041 = vmatpush.msra.mxu0 %v1867
      %2042 = vmatpush.msra.mxu0 %v1865
      %2043 = vmatpush.msra.mxu0 %v1863
      %2044 = vmatpush.msra.mxu0 %v1861
      %2045 = vmatpush.msra.mxu0 %v1859
      %2046 = vmatpush.msra.mxu0 %v1857
      %2047 = vmatpush.msra.mxu0 %v1855
      %2048 = vmatpush.msra.mxu0 %v1853
      %2049 = vmatmul.f32.gmra.mxu0 %v1905
      %v2050 = vpop.f32.mrf.mxu0
      %v2051 = vadd.f32 %v2022, %v2050
      %2052 = vmatmul.f32.gmra.mxu0 %v1913
      %v2053 = vpop.f32.mrf.mxu0
      %v2054 = vadd.f32 %v2025, %v2053
      %2055 = vmatmul.f32.gmra.mxu0 %v1921
      %v2056 = vpop.f32.mrf.mxu0
      %v2057 = vadd.f32 %v2028, %v2056
      %2058 = vmatmul.f32.gmra.mxu0 %v1929
      %v2059 = vpop.f32.mrf.mxu0
      %v2060 = vadd.f32 %v2031, %v2059
      %2061 = vdwg.mxu0
      %2062 = vmatpush.msra.mxu0 %v1788
      %2063 = vmatpush.msra.mxu0 %v1786
      %2064 = vmatpush.msra.mxu0 %v1784
      %2065 = vmatpush.msra.mxu0 %v1782
      %2066 = vmatpush.msra.mxu0 %v1780
      %2067 = vmatpush.msra.mxu0 %v1778
      %2068 = vmatpush.msra.mxu0 %v1776
      %2069 = vmatpush.msra.mxu0 %v1774
      %2070 = vmatpush.msra.mxu0 %v1772
      %2071 = vmatpush.msra.mxu0 %v1770
      %2072 = vmatpush.msra.mxu0 %v1768
      %2073 = vmatpush.msra.mxu0 %v1766
      %2074 = vmatpush.msra.mxu0 %v1764
      %2075 = vmatpush.msra.mxu0 %v1762
      %2076 = vmatpush.msra.mxu0 %v1760
      %2077 = vmatpush.msra.mxu0 %v1758
      %2078 = vmatmul.f32.gmra.mxu0 %v1896
      %v2079 = vpop.f32.mrf.mxu0
      %v2080 = vadd.f32 0.0, %v2079
      %2081 = vmatmul.f32.gmra.mxu0 %v1907
      %v2082 = vpop.f32.mrf.mxu0
      %v2083 = vadd.f32 0.0, %v2082
      %2084 = vmatmul.f32.gmra.mxu0 %v1915
      %v2085 = vpop.f32.mrf.mxu0
      %v2086 = vadd.f32 0.0, %v2085
      %2087 = vmatmul.f32.gmra.mxu0 %v1923
      %v2088 = vpop.f32.mrf.mxu0
      %v2089 = vadd.f32 0.0, %v2088
      %2090 = vdwg.mxu0
      %2091 = vmatpush.msra.mxu0 %v1820
      %2092 = vmatpush.msra.mxu0 %v1818
      %2093 = vmatpush.msra.mxu0 %v1816
      %2094 = vmatpush.msra.mxu0 %v1814
      %2095 = vmatpush.msra.mxu0 %v1812
      %2096 = vmatpush.msra.mxu0 %v1810
      %2097 = vmatpush.msra.mxu0 %v1808
      %2098 = vmatpush.msra.mxu0 %v1806
      %2099 = vmatpush.msra.mxu0 %v1804
      %2100 = vmatpush.msra.mxu0 %v1802
      %2101 = vmatpush.msra.mxu0 %v1800
      %2102 = vmatpush.msra.mxu0 %v1798
      %2103 = vmatpush.msra.mxu0 %v1796
      %2104 = vmatpush.msra.mxu0 %v1794
      %2105 = vmatpush.msra.mxu0 %v1792
      %2106 = vmatpush.msra.mxu0 %v1790
      %2107 = vmatmul.f32.gmra.mxu0 %v1899
      %v2108 = vpop.f32.mrf.mxu0
      %v2109 = vadd.f32 %v2080, %v2108
      %2110 = vmatmul.f32.gmra.mxu0 %v1909
      %v2111 = vpop.f32.mrf.mxu0
      %v2112 = vadd.f32 %v2083, %v2111
      %2113 = vmatmul.f32.gmra.mxu0 %v1917
      %v2114 = vpop.f32.mrf.mxu0
      %v2115 = vadd.f32 %v2086, %v2114
      %2116 = vmatmul.f32.gmra.mxu0 %v1925
      %v2117 = vpop.f32.mrf.mxu0
      %v2118 = vadd.f32 %v2089, %v2117
      %2119 = vdwg.mxu0
      %2120 = vmatpush.msra.mxu0 %v1852
      %2121 = vmatpush.msra.mxu0 %v1850
      %2122 = vmatpush.msra.mxu0 %v1848
      %2123 = vmatpush.msra.mxu0 %v1846
      %2124 = vmatpush.msra.mxu0 %v1844
      %2125 = vmatpush.msra.mxu0 %v1842
      %2126 = vmatpush.msra.mxu0 %v1840
      %2127 = vmatpush.msra.mxu0 %v1838
      %2128 = vmatpush.msra.mxu0 %v1836
      %2129 = vmatpush.msra.mxu0 %v1834
      %2130 = vmatpush.msra.mxu0 %v1832
      %2131 = vmatpush.msra.mxu0 %v1830
      %2132 = vmatpush.msra.mxu0 %v1828
      %2133 = vmatpush.msra.mxu0 %v1826
      %2134 = vmatpush.msra.mxu0 %v1824
      %2135 = vmatpush.msra.mxu0 %v1822
      %2136 = vmatmul.f32.gmra.mxu0 %v1902
      %v2137 = vpop.f32.mrf.mxu0
      %v2138 = vadd.f32 %v2109, %v2137
      %2139 = vmatmul.f32.gmra.mxu0 %v1911
      %v2140 = vpop.f32.mrf.mxu0
      %v2141 = vadd.f32 %v2112, %v2140
      %2142 = vmatmul.f32.gmra.mxu0 %v1919
      %v2143 = vpop.f32.mrf.mxu0
      %v2144 = vadd.f32 %v2115, %v2143
      %2145 = vmatmul.f32.gmra.mxu0 %v1927
      %v2146 = vpop.f32.mrf.mxu0
      %v2147 = vadd.f32 %v2118, %v2146
      %2148 = vdwg.mxu0
      %2149 = vmatpush.msra.mxu0 %v1884
      %2150 = vmatpush.msra.mxu0 %v1882
      %2151 = vmatpush.msra.mxu0 %v1880
      %2152 = vmatpush.msra.mxu0 %v1878
      %2153 = vmatpush.msra.mxu0 %v1876
      %2154 = vmatpush.msra.mxu0 %v1874
      %2155 = vmatpush.msra.mxu0 %v1872
      %2156 = vmatpush.msra.mxu0 %v1870
      %2157 = vmatpush.msra.mxu0 %v1868
      %2158 = vmatpush.msra.mxu0 %v1866
      %2159 = vmatpush.msra.mxu0 %v1864
      %2160 = vmatpush.msra.mxu0 %v1862
      %2161 = vmatpush.msra.mxu0 %v1860
      %2162 = vmatpush.msra.mxu0 %v1858
      %2163 = vmatpush.msra.mxu0 %v1856
      %2164 = vmatpush.msra.mxu0 %v1854
      %2165 = vmatmul.f32.gmra.mxu0 %v1905
      %v2166 = vpop.f32.mrf.mxu0
      %v2167 = vadd.f32 %v2138, %v2166
      %2168 = vmatmul.f32.gmra.mxu0 %v1913
      %v2169 = vpop.f32.mrf.mxu0
      %v2170 = vadd.f32 %v2141, %v2169
      %2171 = vmatmul.f32.gmra.mxu0 %v1921
      %v2172 = vpop.f32.mrf.mxu0
      %v2173 = vadd.f32 %v2144, %v2172
      %2174 = vmatmul.f32.gmra.mxu0 %v1929
      %v2175 = vpop.f32.mrf.mxu0
      %v2176 = vadd.f32 %v2147, %v2175
      %2177 = vdwg.mxu0
      %v2178 = vadd.f32 %v1621, %v2051
      %v2179 = vadd.f32 %v1737, %v2167
      %v2180 = vadd.f32 %v1624, %v2054
      %v2181 = vadd.f32 %v1740, %v2170
      %v2182 = vadd.f32 %v1627, %v2057
      %v2183 = vadd.f32 %v1743, %v2173
      %v2184 = vadd.f32 %v1630, %v2060
      %v2185 = vadd.f32 %v1746, %v2176
      %v2186 = vld [vmem:[%s5] sm:$0x3]
      %v2188 = vperm.slane %v2186, 0
      %v2189 = vperm.slane %v2186, 1
      %v2192 = vadd.f32 %v2178, %v2188
      %v2193 = vadd.f32 %v2179, %v2189
      %v2194 = vadd.f32 %v2180, %v2188
      %v2195 = vadd.f32 %v2181, %v2189
      %v2196 = vadd.f32 %v2182, %v2188
      %v2197 = vadd.f32 %v2183, %v2189
      %v2198 = vadd.f32 %v2184, %v2188
      %v2199 = vadd.f32 %v2185, %v2189
      %v2200 = vmax.f32 %v2192, 0.0
      %v2201 = vmax.f32 %v2193, 0.0
      %v2202 = vmax.f32 %v2194, 0.0
      %v2203 = vmax.f32 %v2195, 0.0
      %v2204 = vmax.f32 %v2196, 0.0
      %v2205 = vmax.f32 %v2197, 0.0
      %v2206 = vmax.f32 %v2198, 0.0
      %v2207 = vmax.f32 %v2199, 0.0
      %2208 = vst [vmem:[%s379] sm:$0xff] %v2200
      %2209 = vst [vmem:[%s379 + $0x8] sm:$0xff] %v2201
      %2210 = vst [vmem:[%s379 + $0x10] sm:$0xff] %v2202
      %2211 = vst [vmem:[%s379 + $0x18] sm:$0xff] %v2203
      %2212 = vst [vmem:[%s379 + $0x20] sm:$0xff] %v2204
      %2213 = vst [vmem:[%s379 + $0x28] sm:$0xff] %v2205
      %2214 = vst [vmem:[%s379 + $0x30] sm:$0xff] %v2206
      %2215 = vst [vmem:[%s379 + $0x38] sm:$0xff] %v2207
      %p2216 = scmp.lt.s32.totalorder %s21, 1
      %s2217 = scalar_select %p2216, %s21, 1
      %s2218 = smul.addr %s2217, 8
      %s2219 = smul.addr %s2218, 8
      %s2220 = scalar_lea.vmem %s10, %s2219
      // Predicated region
      $region61: #{_lambda_.1} parent=59 // pred_check
        %p2221 = pneg %p259
      $region62: #{_lambda_.1} parent=59 // pred_check_branch
        %2223 = sbr.rel (%p2221) target = $region64
      $region63: #{_lambda_.1} parent=59 // pred_region
        _
      $region64: #{_lambda_.1} parent=59 // pred_fallthru
        _
    $region60: #{_lambda_.1} parent=5 // pred_fallthru
      _
    %p2224 = scmp.le.s32.totalorder 2, %s16
    // Predicated region
    $region65: #{_lambda_.1} parent=5 // pred_check
      %p2225 = pneg %p2224
    $region66: #{_lambda_.1} parent=5 // pred_check_branch
      %2227 = sbr.rel (%p2225) target = $region68
    $region67: #{_lambda_.1} parent=5 // pred_region
      %s2228 = ssub.s32 %s16, 2
      // Predicated region
      $region69: #{_lambda_.1} parent=67 // pred_check
        %p2229 = pneg %p265
      $region70: #{_lambda_.1} parent=67 // pred_check_branch
        %2231 = sbr.rel (%p2229) target = $region72
      $region71: #{_lambda_.1} parent=67 // pred_region
        %p2232 = scmp.lt.s32.totalorder %s22, 1
        %s2233 = scalar_select %p2232, %s22, 1
        %s2234 = smul.addr %s2233, 8
        %s2235 = smul.addr %s2234, 8
        %s2236 = scalar_lea.vmem %s10, %s2235
      $region72: #{_lambda_.1} parent=67 // pred_fallthru
        _
    $region68: #{_lambda_.1} parent=5 // pred_fallthru
      _
  $region6: #{_lambda_.1} parent=0 // loop_footer
    %s20 = sadd.s32 1, %s16
  $region7: #{_lambda_.1} parent=0 // loop_footer_branch
    %15 = sbr.rel target = $region3
  $region8: #{_lambda_.1} parent=0 // loop_exit
    _

</llo_original>
